<compile_context>
chip_gen: v6e
topology: v6e:2x2x1
jax: 0.10.0
libtpu: 0.0.40
codegen_flags: <defaults>
</compile_context>

<pallas_src>
import functools

import jax
import jax.numpy as jnp
from jax.experimental import pallas as pl
from jax.experimental.pallas import tpu as pltpu


def _round_up(x, m):
    return ((x + m - 1) // m) * m


def _gppt_kernel(a_ref, h_ref, invdeg_ref, w_ref, out_ref, acc_ref, *,
                 tile_k, num_centers, n_classes, h_resident):
    """Grid = (node tile i, reduction tile k); acc_ref holds the un-normalized
    aggregation tile (sum over in-neighbors + self) for the current node tile."""
    k = pl.program_id(1)

    # 1) aggregation: accumulate the (TM, D) tile over reduction tiles.
    @pl.when(k == 0)
    def _():
        acc_ref[...] = jnp.zeros_like(acc_ref)

    if h_resident:
        # H is fully resident in VMEM; slice the k-th reduction chunk in-kernel.
        start = pl.multiple_of(k * tile_k, tile_k)
        h_blk = h_ref[pl.ds(start, tile_k), :]
    else:
        h_blk = h_ref[...]

    acc_ref[...] += jnp.dot(a_ref[...], h_blk, preferred_element_type=jnp.float32)

    # 2-4) finalize once the full contraction for this node tile is done.
    @pl.when(k == pl.num_programs(1) - 1)
    def _():
        # mean aggregation: f32 per-row 1/deg applied AFTER the bf16 contraction,
        # so A streams as exact 0/1 counts and no bf16 rounding touches 1/deg.
        h_agg = acc_ref[...] * invdeg_ref[...]                          # (TM, D) f32

        # ONE small matmul against the concatenated weight slab:
        #   columns [0, K)        -> structure_token scores
        #   columns [K + i*C, +C) -> task_token[i] outputs
        fused = jnp.dot(h_agg, w_ref[...], preferred_element_type=jnp.float32)
        scores = fused[:, :num_centers]                                 # (TM, K)

        # argmax over centers (first occurrence on ties, like jnp.argmax).
        # NOTE: a NaN scores row gives idx == K (row keeps center 0's output),
        # whereas jnp.argmax would return 0 -- benign for normal finite inputs.
        mx = jnp.max(scores, axis=1, keepdims=True)                     # (TM, 1)
        lane = jax.lax.broadcasted_iota(jnp.int32, scores.shape, 1)     # (TM, K)
        idx = jnp.min(jnp.where(scores == mx, lane, num_centers),
                      axis=1, keepdims=True)                            # (TM, 1)

        # select the argmax center's class block (cheap VPU selects, K-1 where()s)
        out = fused[:, num_centers:num_centers + n_classes]
        for i in range(1, num_centers):
            lo = num_centers + i * n_classes
            out = jnp.where(idx == i, fused[:, lo:lo + n_classes], out)

        # lane-dense unmasked store: pad the C class columns to the 128-wide block.
        pad = out_ref.shape[1] - n_classes
        if pad > 0:
            out = jnp.concatenate(
                [out, jnp.zeros((out.shape[0], pad), out.dtype)], axis=1)
        out_ref[...] = out.astype(out_ref.dtype)


def gppt_forward(h, edge_index, ws, wt, *, tile_m=512, tile_k=4096,
                 resident_h=None):
    """h: (N, D) f32 node features.
       edge_index: (2, E) int32, row0 = src (j), row1 = dst (i).
       ws: (center_num, D) structure_token Linear weight.
       wt: (center_num, n_classes, D) stacked task_token Linear weights.

    Defaults are sized for production graphs: A tile = 4 MiB bf16 (8 MiB double
    buffered) -> ~85-90% of HBM roofline while staying well under v7x's 64 MiB VMEM.
    Tiles are clamped automatically for small problems."""
    N, D = h.shape
    K, C, _ = wt.shape
    assert tile_m % 8 == 0 and tile_k % 128 == 0, "tiles must be (8,128)-aligned"

    # Clamp tiles to the padded problem extents (keeps (8,128) alignment).
    tile_m = min(tile_m, _round_up(N, 8))
    tile_k = min(tile_k, _round_up(N, 128))

    n_rows = _round_up(N, tile_m)   # node (output) axis
    n_cols = _round_up(N, tile_k)   # reduction axis
    grid = (n_rows // tile_m, n_cols // tile_k)
    # NOTE(v7x megacore): for best 2-TC balance pick tile_m so grid[0] is a
    # multiple of 2 on large graphs.

    c_out = _round_up(C, 128)       # lane-dense output width

    # --- glue: adjacency as exact edge-count values, built DIRECTLY in bf16 into the
    # pre-padded buffer (single O(N^2) buffer + O(E) scatter); per-row 1/deg stays f32
    # and is applied inside the kernel after accumulation (degrees computed in O(E)).
    # TODO(synk): for large sparse graphs replace the dense A (O(N^2) HBM traffic)
    # with a segment-mean aggregation outside the kernel, or a CSR gather using
    # PrefetchScalarGridSpec row-pointer prefetch + pltpu.make_async_copy.
    idx_self = jnp.arange(N, dtype=edge_index.dtype)
    src = jnp.concatenate([edge_index[0], idx_self])
    dst = jnp.concatenate([edge_index[1], idx_self])
    a_p = jnp.zeros((n_rows, n_cols), jnp.bfloat16).at[dst, src].add(
        jnp.ones(src.shape, jnp.bfloat16))
    # TODO(synk): on v7x the exact 0/1 counts could stream as fp8 to halve A traffic.

    deg = jnp.zeros((n_rows,), jnp.float32).at[dst].add(1.0)   # self loop -> deg >= 1
    inv_deg = jnp.where(deg > 0.0, 1.0 / deg, 0.0).reshape(n_rows, 1)

    h_p = jnp.zeros((n_cols, D), jnp.bfloat16).at[:N, :].set(h.astype(jnp.bfloat16))

    # Pre-transposed f32 weights packed into ONE (D, K + K*C) resident slab:
    # structure_token columns first, then each center's task_token columns.
    ws_t = ws.T.astype(jnp.float32)                                      # (D, K)
    wt_t = jnp.transpose(wt, (2, 0, 1)).reshape(D, K * C).astype(jnp.float32)
    w_slab = jnp.concatenate([ws_t, wt_t], axis=1)                       # (D, K + K*C)

    # Keep H fully VMEM-resident (DMA'd once) when its lane-padded footprint is small;
    # otherwise tile it along the reduction axis like before.
    h_vmem_bytes = n_cols * _round_up(D, 128) * 2
    if resident_h is None:
        resident_h = h_vmem_bytes <= (8 << 20)

    if resident_h:
        h_spec = pl.BlockSpec((n_cols, D), lambda i, k: (0, 0))
        h_vmem = h_vmem_bytes
    else:
        h_spec = pl.BlockSpec((tile_k, D), lambda i, k: (k, 0))
        h_vmem = 2 * tile_k * _round_up(D, 128) * 2

    vmem_est = (2 * tile_m * tile_k * 2                  # A, double-buffered bf16
                + h_vmem
                + 2 * tile_m * 128 * 4                   # 1/deg blocks (lane-padded)
                + 2 * D * _round_up(K + K * C, 128) * 4  # weight slab
                + 2 * tile_m * c_out * 4                 # out blocks
                + tile_m * _round_up(D, 128) * 4)        # accumulator scratch
    vmem_limit = int(min(max(vmem_est + (16 << 20), 32 << 20), 64 << 20))

    h_traffic = (n_cols * D * 2) * (1 if resident_h else grid[0])
    cost = pl.CostEstimate(
        flops=2 * n_rows * n_cols * D + 2 * n_rows * D * (K + K * C),
        transcendentals=0,
        bytes_accessed=(a_p.size * 2 + h_traffic + w_slab.size * 4
                        + n_rows * 4 + n_rows * c_out * 4),
    )

    kernel = functools.partial(_gppt_kernel, tile_k=tile_k, num_centers=K,
                               n_classes=C, h_resident=resident_h)

    out_padded = pl.pallas_call(
        kernel,
        out_shape=jax.ShapeDtypeStruct((n_rows, c_out), jnp.float32),
        grid_spec=pltpu.PrefetchScalarGridSpec(
            num_scalar_prefetch=0,
            grid=grid,
            in_specs=[
                pl.BlockSpec((tile_m, tile_k), lambda i, k: (i, k)),    # A tile (bf16)
                h_spec,                                                 # H (bf16)
                pl.BlockSpec((tile_m, 1), lambda i, k: (i, 0)),         # 1/deg (f32)
                pl.BlockSpec((D, K + K * C), lambda i, k: (0, 0)),      # weight slab
            ],
            out_specs=pl.BlockSpec((tile_m, c_out), lambda i, k: (i, 0)),
            scratch_shapes=[pltpu.VMEM((tile_m, D), jnp.float32)],      # agg accumulator
        ),
        compiler_params=pltpu.CompilerParams(
            dimension_semantics=("parallel", "arbitrary"),
            vmem_limit_bytes=vmem_limit,
        ),
        cost_estimate=cost,
    )(a_p, h_p, inv_deg, w_slab)

    return out_padded[:N, :C]


def gppt_reference(h, edge_index, ws, wt):
    """Pure-JAX reference mirroring the PyTorch forward (with the same bf16
    quantization of H the kernel uses for its memory-bound operand; adjacency
    counts are exact in both)."""
    N, D = h.shape
    idx_self = jnp.arange(N, dtype=edge_index.dtype)
    src = jnp.concatenate([edge_index[0], idx_self])
    dst = jnp.concatenate([edge_index[1], idx_self])
    A = jnp.zeros((N, N), dtype=jnp.float32).at[dst, src].add(1.0)
    deg = A.sum(axis=1, keepdims=True)                  # self loop -> deg >= 1
    hq = h.astype(jnp.bfloat16).astype(jnp.float32)
    h_agg = (A @ hq) / deg
    scores = h_agg @ ws.T
    idx = jnp.argmax(scores, axis=1)
    all_out = jnp.einsum("nd,kcd->nkc", h_agg, wt)
    return jnp.take_along_axis(all_out, idx[:, None, None], axis=1)[:, 0, :]


if __name__ == "__main__":
    # Small, module-consistent shapes (chosen so the 2x2 tile grid — k-axis
    # accumulator, parallel node axis, pipelining — is actually exercised).
    N = 256          # number of graph nodes
    D = 32           # n_hidden
    CENTER_NUM = 4   # center_num
    N_CLASSES = 8    # n_classes
    E = 1024         # number of directed edges

    key = jax.random.PRNGKey(0)
    k_h, k_e1, k_e2, k_ws, k_wt = jax.random.split(key, 5)

    h = jax.random.normal(k_h, (N, D), dtype=jnp.float32)
    edge_index = jnp.stack([
        jax.random.randint(k_e1, (E,), 0, N, dtype=jnp.int32),
        jax.random.randint(k_e2, (E,), 0, N, dtype=jnp.int32),
    ], axis=0)

    # nn.Linear(n_hidden, center_num / n_classes, bias=False) style init
    bound = 1.0 / (D ** 0.5)
    ws = jax.random.uniform(k_ws, (CENTER_NUM, D), jnp.float32, -bound, bound)
    wt = jax.random.uniform(k_wt, (CENTER_NUM, N_CLASSES, D), jnp.float32, -bound, bound)

    ref = gppt_reference(h, edge_index, ws, wt)

    # Small tiles -> 2x2 grid: exercises the k-axis accumulator, the parallel node
    # axis, and the resident-H fast path.  Production defaults are tile_m=512,
    # tile_k=4096 (4 MiB bf16 A tile, 8 MiB double-buffered).
    out = jax.block_until_ready(
        gppt_forward(h, edge_index, ws, wt, tile_m=128, tile_k=128))
    assert out.shape == (N, N_CLASSES)
    assert jnp.allclose(out, ref, atol=2e-2, rtol=2e-2), "mismatch (resident H)"

    # Tiled-H path (used when H does not fit the VMEM residency budget).
    out_tiled = jax.block_until_ready(
        gppt_forward(h, edge_index, ws, wt, tile_m=128, tile_k=128, resident_h=False))
    assert jnp.allclose(out_tiled, ref, atol=2e-2, rtol=2e-2), "mismatch (tiled H)"

    # Default (large) tiles, automatically clamped to this small problem.
    out_big = jax.block_until_ready(gppt_forward(h, edge_index, ws, wt))
    assert jnp.allclose(out_big, ref, atol=2e-2, rtol=2e-2), "mismatch (default tiles)"

    # TODO(synk): kmeans / weight_init / update_structuretoken_weight are @no_grad
    # setup utilities, not part of forward; intentionally not implemented as kernels.
    print("KERNEL_OK")
</pallas_src>

<mosaic_0001>
module attributes {stable_mosaic.version = 11 : i64} {
  func.func @_gppt_kernel(%arg0: i32, %arg1: i32, %arg2: memref<128x128xbf16, #tpu.memory_space<vmem>>, %arg3: memref<256x32xbf16, #tpu.memory_space<vmem>>, %arg4: memref<128x1xf32, #tpu.memory_space<vmem>>, %arg5: memref<32x36xf32, #tpu.memory_space<vmem>>, %arg6: memref<128x128xf32, #tpu.memory_space<vmem>>, %arg7: memref<128x32xf32, #tpu.memory_space<vmem>>) attributes {dimension_semantics = [#tpu.dimension_semantics<parallel>, #tpu.dimension_semantics<arbitrary>], iteration_bounds = array<i64: 2, 2>, scalar_prefetch = 0 : i64, scratch_operands = 1 : i64, tpu.core_type = #tpu.core_type<tc>, window_params = [{transform_indices = @transform_0, window_bounds = array<i64: 128, 128>}, {pipeline_mode = #tpu.pipeline_mode<synchronous>, transform_indices = @transform_1, window_bounds = array<i64: 256, 32>}, {transform_indices = @transform_2, window_bounds = array<i64: 128, 1>}, {pipeline_mode = #tpu.pipeline_mode<synchronous>, transform_indices = @transform_3, window_bounds = array<i64: 32, 36>}, {transform_indices = @transform_4, window_bounds = array<i64: 128, 128>}]} {
    %c0_i32 = arith.constant 0 : i32
    %0 = arith.cmpi eq, %arg1, %c0_i32 : i32
    %1 = arith.extui %0 : i1 to i32
    %c0_i32_0 = arith.constant 0 : i32
    %2 = arith.cmpi ne, %1, %c0_i32_0 : i32
    scf.if %2 {
      %cst_8 = arith.constant 0.000000e+00 : f32
      %15 = vector.broadcast %cst_8 : f32 to vector<128x32xf32>
      %c0_9 = arith.constant 0 : index
      %c0_10 = arith.constant 0 : index
      %16 = vector.load %arg7[%c0_9, %c0_10] : memref<128x32xf32, #tpu.memory_space<vmem>>, vector<128x32xf32>
      tpu.vector_store %arg7[%c0_9, %c0_10], %15 {strides = array<i32>} : memref<128x32xf32, #tpu.memory_space<vmem>>, vector<128x32xf32>,
    } else {
    }
    %c128_i32 = arith.constant 128 : i32
    %3 = arith.muli %arg1, %c128_i32 : i32
    %4 = tpu.assume_multiple %3, 128 : i32
    %5 = arith.index_cast %4 : i32 to index
    %c0 = arith.constant 0 : index
    %6 = vector.load %arg3[%5, %c0] : memref<256x32xbf16, #tpu.memory_space<vmem>>, vector<128x32xbf16>
    %c0_1 = arith.constant 0 : index
    %c0_2 = arith.constant 0 : index
    %7 = vector.load %arg7[%c0_1, %c0_2] : memref<128x32xf32, #tpu.memory_space<vmem>>, vector<128x32xf32>
    %c0_3 = arith.constant 0 : index
    %c0_4 = arith.constant 0 : index
    %8 = vector.load %arg2[%c0_3, %c0_4] : memref<128x128xbf16, #tpu.memory_space<vmem>>, vector<128x128xbf16>
    %cst = arith.constant dense<0.000000e+00> : vector<128x32xf32>
    %9 = tpu.matmul %8, %6, %cst {dimension_numbers = #tpu.dot_dimension_numbers<[1], [0], [0], [1], [0, 0, 1, 1], [], []>} : vector<128x128xbf16>, vector<128x32xbf16>, vector<128x32xf32> -> vector<128x32xf32>
    %10 = arith.addf %7, %9 : vector<128x32xf32>
    %c0_5 = arith.constant 0 : index
    %c0_6 = arith.constant 0 : index
    %11 = vector.load %arg7[%c0_5, %c0_6] : memref<128x32xf32, #tpu.memory_space<vmem>>, vector<128x32xf32>
    tpu.vector_store %arg7[%c0_5, %c0_6], %10 {strides = array<i32>} : memref<128x32xf32, #tpu.memory_space<vmem>>, vector<128x32xf32>,
    %c1_i32 = arith.constant 1 : i32
    %12 = arith.cmpi eq, %arg1, %c1_i32 : i32
    %13 = arith.extui %12 : i1 to i32
    %c0_i32_7 = arith.constant 0 : i32
    %14 = arith.cmpi ne, %13, %c0_i32_7 : i32
    scf.if %14 {
      %c0_8 = arith.constant 0 : index
      %c0_9 = arith.constant 0 : index
      %15 = vector.load %arg7[%c0_8, %c0_9] : memref<128x32xf32, #tpu.memory_space<vmem>>, vector<128x32xf32>
      %c0_10 = arith.constant 0 : index
      %c0_11 = arith.constant 0 : index
      %16 = vector.load %arg4[%c0_10, %c0_11] : memref<128x1xf32, #tpu.memory_space<vmem>>, vector<128x1xf32>
      %17 = vector.broadcast %16 : vector<128x1xf32> to vector<128x32xf32>
      %18 = arith.mulf %15, %17 : vector<128x32xf32>
      %c0_12 = arith.constant 0 : index
      %c0_13 = arith.constant 0 : index
      %19 = vector.load %arg5[%c0_12, %c0_13] : memref<32x36xf32, #tpu.memory_space<vmem>>, vector<32x36xf32>
      %cst_14 = arith.constant dense<0.000000e+00> : vector<128x36xf32>
      %20 = tpu.matmul %18, %19, %cst_14 {dimension_numbers = #tpu.dot_dimension_numbers<[1], [0], [0], [1], [0, 0, 1, 1], [], []>} : vector<128x32xf32>, vector<32x36xf32>, vector<128x36xf32> -> vector<128x36xf32>
      %21 = vector.extract_strided_slice %20 {offsets = [0, 0], sizes = [128, 4], strides = [1, 1]} : vector<128x36xf32> to vector<128x4xf32>
      %cst_15 = arith.constant dense<0xFF800000> : vector<128xf32>
      %22 = vector.multi_reduction <maximumf>, %21, %cst_15 [1] : vector<128x4xf32> to vector<128xf32>
      %23 = vector.shape_cast %22 : vector<128xf32> to vector<128x1xf32>
      %24 = tpu.iota {dimensions = array<i32: 1>} : vector<128x4xi32>
      %25 = vector.broadcast %23 : vector<128x1xf32> to vector<128x4xf32>
      %26 = arith.cmpf oeq, %21, %25 : vector<128x4xf32>
      %c4_i32 = arith.constant 4 : i32
      %27 = vector.broadcast %c4_i32 : i32 to vector<128x4xi32>
      %28 = arith.select %26, %24, %27 : vector<128x4xi1>, vector<128x4xi32>
      %cst_16 = arith.constant dense<2147483647> : vector<128xi32>
      %29 = vector.multi_reduction <minsi>, %28, %cst_16 [1] : vector<128x4xi32> to vector<128xi32>
      %30 = vector.shape_cast %29 : vector<128xi32> to vector<128x1xi32>
      %31 = vector.extract_strided_slice %20 {offsets = [0, 4], sizes = [128, 8], strides = [1, 1]} : vector<128x36xf32> to vector<128x8xf32>
      %c1_i32_17 = arith.constant 1 : i32
      %32 = vector.broadcast %c1_i32_17 : i32 to vector<128x1xi32>
      %33 = arith.cmpi eq, %30, %32 : vector<128x1xi32>
      %34 = vector.extract_strided_slice %20 {offsets = [0, 12], sizes = [128, 8], strides = [1, 1]} : vector<128x36xf32> to vector<128x8xf32>
      %35 = vector.shape_cast %33 : vector<128x1xi1> to vector<128x1xi1>
      %36 = vector.broadcast %35 : vector<128x1xi1> to vector<128x8xi1>
      %37 = arith.select %36, %34, %31 : vector<128x8xi1>, vector<128x8xf32>
      %c2_i32 = arith.constant 2 : i32
      %38 = vector.broadcast %c2_i32 : i32 to vector<128x1xi32>
      %39 = arith.cmpi eq, %30, %38 : vector<128x1xi32>
      %40 = vector.extract_strided_slice %20 {offsets = [0, 20], sizes = [128, 8], strides = [1, 1]} : vector<128x36xf32> to vector<128x8xf32>
      %41 = vector.shape_cast %39 : vector<128x1xi1> to vector<128x1xi1>
      %42 = vector.broadcast %41 : vector<128x1xi1> to vector<128x8xi1>
      %43 = arith.select %42, %40, %37 : vector<128x8xi1>, vector<128x8xf32>
      %c3_i32 = arith.constant 3 : i32
      %44 = vector.broadcast %c3_i32 : i32 to vector<128x1xi32>
      %45 = arith.cmpi eq, %30, %44 : vector<128x1xi32>
      %46 = vector.extract_strided_slice %20 {offsets = [0, 28], sizes = [128, 8], strides = [1, 1]} : vector<128x36xf32> to vector<128x8xf32>
      %47 = vector.shape_cast %45 : vector<128x1xi1> to vector<128x1xi1>
      %48 = vector.broadcast %47 : vector<128x1xi1> to vector<128x8xi1>
      %49 = arith.select %48, %46, %43 : vector<128x8xi1>, vector<128x8xf32>
      %cst_18 = arith.constant 0.000000e+00 : f32
      %50 = vector.broadcast %cst_18 : f32 to vector<128x120xf32>
      %51 = tpu.concatenate %49, %50 in 1 : vector<128x8xf32>, vector<128x120xf32> -> vector<128x128xf32>
      %c0_19 = arith.constant 0 : index
      %c0_20 = arith.constant 0 : index
      %52 = vector.load %arg6[%c0_19, %c0_20] : memref<128x128xf32, #tpu.memory_space<vmem>>, vector<128x128xf32>
      tpu.vector_store %arg6[%c0_19, %c0_20], %51 {strides = array<i32>} : memref<128x128xf32, #tpu.memory_space<vmem>>, vector<128x128xf32>,
    } else {
    }
    return
  }
  func.func @transform_0(%arg0: i32, %arg1: i32) -> (i32, i32) {
    %c0_i32 = arith.constant 0 : i32
    return %arg0, %arg1 : i32, i32
  }
  func.func @transform_1(%arg0: i32, %arg1: i32) -> (i32, i32) {
    %c0_i32 = arith.constant 0 : i32
    %c0_i32_0 = arith.constant 0 : i32
    %c0_i32_1 = arith.constant 0 : i32
    return %c0_i32, %c0_i32_0 : i32, i32
  }
  func.func @transform_2(%arg0: i32, %arg1: i32) -> (i32, i32) {
    %c0_i32 = arith.constant 0 : i32
    %c0_i32_0 = arith.constant 0 : i32
    return %arg0, %c0_i32 : i32, i32
  }
  func.func @transform_3(%arg0: i32, %arg1: i32) -> (i32, i32) {
    %c0_i32 = arith.constant 0 : i32
    %c0_i32_0 = arith.constant 0 : i32
    %c0_i32_1 = arith.constant 0 : i32
    return %c0_i32, %c0_i32_0 : i32, i32
  }
  func.func @transform_4(%arg0: i32, %arg1: i32) -> (i32, i32) {
    %c0_i32 = arith.constant 0 : i32
    %c0_i32_0 = arith.constant 0 : i32
    return %arg0, %c0_i32 : i32, i32
  }
}

</mosaic_0001>

<llo_original>
// kernel: tpu_custom_call.1
$region0: #{tpu_custom_call.1}
  #allocation0 [shape = 'u32[]', space=smem, size = 0x4, offset = 0x4, fixed_abs, tag = 'smem constant byte address 0x4 - core index']
  #allocation1 [shape = 'u32[144,128]{1,0:T(1,128)}', space=vmem, size = 0x12000, scoped, tag = 'internal scratch']
  #allocation2 [shape = 'f32[128,32]{1,0:T(8,128)}', space=vmem, size = 0x10000, scoped, tag = 'scratch operand']
  %s0 = inlined_call_operand.vmem [shape: bf16[256,256], index: 0, kind: input, shape index: {}]
  %s1 = inlined_call_operand.vmem [shape: bf16[256,32], index: 1, kind: input, shape index: {}]
  %s2 = inlined_call_operand.vmem [shape: f32[256,1], index: 2, kind: input, shape index: {}]
  %s3 = inlined_call_operand.vmem [shape: f32[32,36], index: 3, kind: input, shape index: {}]
  %s4 = inlined_call_operand.hbm [shape: f32[256,128], index: 4, kind: output, shape index: {}]
  %s5 = sld [smem:[#allocation0]]
  $region98: #{tpu_custom_call.1} parent=0
    _
  %s7 = ssub.s32 1, %s5
  %s8 = scalar_select 0, %s7, %s5
  $region1: #{tpu_custom_call.1} parent=0
    #allocation3 [shape = 'u8[65536]{0}', space=vmem, size = 0x10000, scoped, tag = 'input window, operand 0']
    #allocation4 [shape = 'u8[131072]{0}', space=vmem, size = 0x20000, scoped, tag = 'output window, operand 0']
    #allocation5 [shape = 's32[2]{0}', space=sflag, size = 0x8, scoped, tag = 'scoped memory for tpu_custom_call.1']
    %9 = vsyncpa [#allocation5], 0
    %s10 = scalar_lea.sflag [#allocation5], 1
    %11 = vsyncpa %s10, 0
    loop: start=0, step=1, limit=6
    $region2: #{tpu_custom_call.1} parent=1 // loop_pre_header
      _
    $region3: #{tpu_custom_call.1} parent=1 // loop_header
      %s13 = sphi 0, %s17
      %p14 = scmp.ge.s32.totalorder %s13, 6
      %s20 = sphi 0, %s32
      %s21 = sphi 0, %s28
      %s22 = sphi 0, %s20
      %s23 = sphi 0, %s21
      %s24 = sphi 0, %s22
      %s25 = sphi 0, %s23
      %s37 = sphi 0, %s39
      %s40 = sphi 0, %s37
      %s41 = sphi 0, %s40
      %s57 = sphi 0, %s41
      %s61 = sphi 0, %s61
      %s63 = sphi 0, %s61
      %s64 = sphi 0, %s63
      %s78 = sphi 0, %s64
      %s84 = sphi 0, %s86
      %s87 = sphi 0, %s84
      %s88 = sphi 0, %s87
      %s104 = sphi 0, %s88
      %s108 = sphi 0, %s108
      %s110 = sphi 0, %s108
      %s111 = sphi 0, %s110
      %s125 = sphi 0, %s111
      %s131 = sphi 0, %s133
      %s134 = sphi 0, %s131
      %s135 = sphi 0, %s134
      %s151 = sphi 0, %s135
    $region4: #{tpu_custom_call.1} parent=1 // loop_header_branch
      %16 = sbr.rel (%p14) target = $region8
    $region5: #{tpu_custom_call.1} parent=1 // loop_body
      %s18 = ssub.s32 %s13, 1
      %s19 = ssub.s32 %s13, 2
      %s26 = sadd.s32 1, %s21
      %p27 = scmp.ge.s32.totalorder %s26, 2
      %s28 = scalar_select %p27, 0, %s26
      %s29 = sadd.s32 1, %s20
      %s30 = scalar_select %p27, %s29, %s20
      %p31 = scmp.ge.s32.totalorder %s30, 2
      %s32 = scalar_select %p31, 0, %s30
      %s33 = ssub.s32 %s20, %s32
      %s34 = ssub.s32 %s21, %s28
      %s35 = sor.u32 %s33, %s34
      %p36 = scmp.eq.s32.totalorder %s35, 0
      %s38 = sadd.s32 %s37, 1
      %s39 = scalar_select %p36, %s37, %s38
      %p42 = pneg %p36
      %p43 = scmp.eq.s32.totalorder %s13, 3
      %p44 = por %p42, %p43
      %p45 = scmp.ne.s32.totalorder %s37, %s40
      %p46 = scmp.eq.s32.totalorder %s13, 0
      %p47 = por %p45, %p46
      %p48 = scmp.ne.s32.totalorder %s37, %s40
      %p49 = scmp.eq.s32.totalorder %s18, 3
      %p50 = por %p48, %p49
      %p51 = scmp.ne.s32.totalorder %s40, %s41
      %p52 = scmp.eq.s32.totalorder %s18, 0
      %p53 = por %p51, %p52
      %p54 = scmp.ne.s32.totalorder %s40, %s41
      %p55 = scmp.eq.s32.totalorder %s19, 3
      %p56 = por %p54, %p55
      %p58 = scmp.ne.s32.totalorder %s41, %s57
      %p59 = scmp.eq.s32.totalorder %s19, 0
      %p60 = por %p58, %p59
      %s62 = sadd.s32 %s61, 1
      %p65 = scmp.eq.s32.totalorder %s13, 3
      %p66 = scmp.ne.s32.totalorder %s61, %s63
      %p67 = scmp.eq.s32.totalorder %s13, 0
      %p68 = por %p66, %p67
      %p69 = scmp.ne.s32.totalorder %s61, %s63
      %p70 = scmp.eq.s32.totalorder %s18, 3
      %p71 = por %p69, %p70
      %p72 = scmp.ne.s32.totalorder %s63, %s64
      %p73 = scmp.eq.s32.totalorder %s18, 0
      %p74 = por %p72, %p73
      %p75 = scmp.ne.s32.totalorder %s63, %s64
      %p76 = scmp.eq.s32.totalorder %s19, 3
      %p77 = por %p75, %p76
      %p79 = scmp.ne.s32.totalorder %s64, %s78
      %p80 = scmp.eq.s32.totalorder %s19, 0
      %p81 = por %p79, %p80
      %s82 = ssub.s32 %s20, %s32
      %p83 = scmp.eq.s32.totalorder %s82, 0
      %s85 = sadd.s32 %s84, 1
      %s86 = scalar_select %p83, %s84, %s85
      %p89 = pneg %p83
      %p90 = scmp.eq.s32.totalorder %s13, 3
      %p91 = por %p89, %p90
      %p92 = scmp.ne.s32.totalorder %s84, %s87
      %p93 = scmp.eq.s32.totalorder %s13, 0
      %p94 = por %p92, %p93
      %p95 = scmp.ne.s32.totalorder %s84, %s87
      %p96 = scmp.eq.s32.totalorder %s18, 3
      %p97 = por %p95, %p96
      %p98 = scmp.ne.s32.totalorder %s87, %s88
      %p99 = scmp.eq.s32.totalorder %s18, 0
      %p100 = por %p98, %p99
      %p101 = scmp.ne.s32.totalorder %s87, %s88
      %p102 = scmp.eq.s32.totalorder %s19, 3
      %p103 = por %p101, %p102
      %p105 = scmp.ne.s32.totalorder %s88, %s104
      %p106 = scmp.eq.s32.totalorder %s19, 0
      %p107 = por %p105, %p106
      %s109 = sadd.s32 %s108, 1
      %p112 = scmp.eq.s32.totalorder %s13, 3
      %p113 = scmp.ne.s32.totalorder %s108, %s110
      %p114 = scmp.eq.s32.totalorder %s13, 0
      %p115 = por %p113, %p114
      %p116 = scmp.ne.s32.totalorder %s108, %s110
      %p117 = scmp.eq.s32.totalorder %s18, 3
      %p118 = por %p116, %p117
      %p119 = scmp.ne.s32.totalorder %s110, %s111
      %p120 = scmp.eq.s32.totalorder %s18, 0
      %p121 = por %p119, %p120
      %p122 = scmp.ne.s32.totalorder %s110, %s111
      %p123 = scmp.eq.s32.totalorder %s19, 3
      %p124 = por %p122, %p123
      %p126 = scmp.ne.s32.totalorder %s111, %s125
      %p127 = scmp.eq.s32.totalorder %s19, 0
      %p128 = por %p126, %p127
      %s129 = ssub.s32 %s20, %s32
      %p130 = scmp.eq.s32.totalorder %s129, 0
      %s132 = sadd.s32 %s131, 1
      %s133 = scalar_select %p130, %s131, %s132
      %p136 = pneg %p130
      %p137 = scmp.eq.s32.totalorder %s13, 3
      %p138 = por %p136, %p137
      %p139 = scmp.ne.s32.totalorder %s131, %s134
      %p140 = scmp.eq.s32.totalorder %s13, 0
      %p141 = por %p139, %p140
      %p142 = scmp.ne.s32.totalorder %s131, %s134
      %p143 = scmp.eq.s32.totalorder %s18, 3
      %p144 = por %p142, %p143
      %p145 = scmp.ne.s32.totalorder %s134, %s135
      %p146 = scmp.eq.s32.totalorder %s18, 0
      %p147 = por %p145, %p146
      %p148 = scmp.ne.s32.totalorder %s134, %s135
      %p149 = scmp.eq.s32.totalorder %s19, 3
      %p150 = por %p148, %p149
      %p152 = scmp.ne.s32.totalorder %s135, %s151
      %p153 = scmp.eq.s32.totalorder %s19, 0
      %p154 = por %p152, %p153
      %p155 = scmp.le.s32.totalorder 1, %s13
      %p156 = scmp.lt.s32.totalorder %s13, 5
      %p157 = pnand %p155, %p156
      %p158 = pneg %p157
      // Predicated region
      $region9: #{tpu_custom_call.1} parent=5 // pred_check
        _
      $region10: #{tpu_custom_call.1} parent=5 // pred_check_branch
        %160 = sbr.rel (%p157) target = $region12
      $region11: #{tpu_custom_call.1} parent=5 // pred_region
        %s161 = ssub.s32 %s13, 1
        // Predicated region
        $region13: #{tpu_custom_call.1} parent=11 // pred_check
          %p162 = pneg %p74
        $region14: #{tpu_custom_call.1} parent=11 // pred_check_branch
          %164 = sbr.rel (%p162) target = $region16
        $region15: #{tpu_custom_call.1} parent=11 // pred_region
          _
        $region16: #{tpu_custom_call.1} parent=11 // pred_fallthru
          _
        // Predicated region
        $region17: #{tpu_custom_call.1} parent=11 // pred_check
          %p165 = pneg %p121
        $region18: #{tpu_custom_call.1} parent=11 // pred_check_branch
          %167 = sbr.rel (%p165) target = $region20
        $region19: #{tpu_custom_call.1} parent=11 // pred_region
          _
        $region20: #{tpu_custom_call.1} parent=11 // pred_fallthru
          _
      $region12: #{tpu_custom_call.1} parent=5 // pred_fallthru
        _
      %p168 = scmp.lt.s32.totalorder %s13, 4
      // Predicated region
      $region21: #{tpu_custom_call.1} parent=5 // pred_check
        %p169 = pneg %p168
      $region22: #{tpu_custom_call.1} parent=5 // pred_check_branch
        %171 = sbr.rel (%p169) target = $region24
      $region23: #{tpu_custom_call.1} parent=5 // pred_region
        // Predicated region
        $region25: #{tpu_custom_call.1} parent=23 // pred_check
          %p172 = pneg %p47
        $region26: #{tpu_custom_call.1} parent=23 // pred_check_branch
          %174 = sbr.rel (%p172) target = $region28
        $region27: #{tpu_custom_call.1} parent=23 // pred_region
          %s175 = sand.u32 %s37, 1
          %s176 = sand.u32 %s37, 1
          %s177 = smul.addr %s176, 64
          %s178 = scalar_lea.vmem [#allocation3], %s177
          %s179 = smul.u32 16, %s20
          %s180 = smul.addr %s179, 2
          %s181 = sadd.s32 %s21, %s180
          %s182 = smul.addr %s181, 4
          %s183 = scalar_lea.vmem %s0, %s182
          // Predicated region
          $region29: #{tpu_custom_call.1} parent=27 // pred_check
            _
          $region30: #{tpu_custom_call.1} parent=27 // pred_check_branch
            %185 = sbr.rel (0) target = $region32
          $region31: #{tpu_custom_call.1} parent=27 // pred_region
            // Predicated region
            $region33: #{tpu_custom_call.1} parent=31 // pred_check
              _
            $region34: #{tpu_custom_call.1} parent=31 // pred_check_branch
              %187 = sbr.rel target = $region36
            $region35: #{tpu_custom_call.1} parent=31 // pred_region
              // Predicated region
              $region48: #{tpu_custom_call.1} parent=35 // pred_check
                _
              $region49: #{tpu_custom_call.1} parent=35 // pred_check_branch
                %233 = sbr.rel (0) target = $region51
              $region50: #{tpu_custom_call.1} parent=35 // pred_region
                loop: start=0, step=1, limit=1
                $region52: #{tpu_custom_call.1} parent=50 // loop_pre_header
                  _
                $region53: #{tpu_custom_call.1} parent=50 // loop_header
                  %s235 = sphi 0, %s239
                  %p236 = scmp.ge.s32.totalorder %s235, 1
                  %s240 = sphi %s183, %s183
                  %s241 = sphi %s178, %s178
                $region54: #{tpu_custom_call.1} parent=50 // loop_header_branch
                  %238 = sbr.rel (%p236) target = $region58
                $region55: #{tpu_custom_call.1} parent=50 // loop_body
                  _
                $region56: #{tpu_custom_call.1} parent=50 // loop_footer
                  %s239 = sadd.s32 1, %s235
                $region57: #{tpu_custom_call.1} parent=50 // loop_footer_branch
                  %234 = sbr.rel target = $region53
                $region58: #{tpu_custom_call.1} parent=50 // loop_exit
                  _
                %s243 = ssub.s32 16, 1
                loop: start=0, step=1, limit=1
                $region59: #{tpu_custom_call.1} parent=50 // loop_pre_header
                  _
                $region60: #{tpu_custom_call.1} parent=50 // loop_header
                  %s245 = sphi 0, %s249
                  %p246 = scmp.ge.s32.totalorder %s245, 1
                  %s250 = sphi %s183, %s183
                  %s251 = sphi %s178, %s178
                $region61: #{tpu_custom_call.1} parent=50 // loop_header_branch
                  %248 = sbr.rel (%p246) target = $region65
                $region62: #{tpu_custom_call.1} parent=50 // loop_body
                  %v252 = vld [vmem:[%s250] sm:%s243]
                  %253 = vst [vmem:[%s251] sm:%s243] %v252
                  %v254 = vld [vmem:[%s250 + $0x8] sm:%s243]
                  %255 = vst [vmem:[%s251 + $0x4] sm:%s243] %v254
                  %v256 = vld [vmem:[%s250 + $0x10] sm:%s243]
                  %257 = vst [vmem:[%s251 + $0x8] sm:%s243] %v256
                  %v258 = vld [vmem:[%s250 + $0x18] sm:%s243]
                  %259 = vst [vmem:[%s251 + $0xc] sm:%s243] %v258
                  %v260 = vld [vmem:[%s250 + $0x20] sm:%s243]
                  %261 = vst [vmem:[%s251 + $0x10] sm:%s243] %v260
                  %v262 = vld [vmem:[%s250 + $0x28] sm:%s243]
                  %263 = vst [vmem:[%s251 + $0x14] sm:%s243] %v262
                  %v264 = vld [vmem:[%s250 + $0x30] sm:%s243]
                  %265 = vst [vmem:[%s251 + $0x18] sm:%s243] %v264
                  %v266 = vld [vmem:[%s250 + $0x38] sm:%s243]
                  %267 = vst [vmem:[%s251 + $0x1c] sm:%s243] %v266
                  %v268 = vld [vmem:[%s250 + $0x40] sm:%s243]
                  %269 = vst [vmem:[%s251 + $0x20] sm:%s243] %v268
                  %v270 = vld [vmem:[%s250 + $0x48] sm:%s243]
                  %271 = vst [vmem:[%s251 + $0x24] sm:%s243] %v270
                  %v272 = vld [vmem:[%s250 + $0x50] sm:%s243]
                  %273 = vst [vmem:[%s251 + $0x28] sm:%s243] %v272
                  %v274 = vld [vmem:[%s250 + $0x58] sm:%s243]
                  %275 = vst [vmem:[%s251 + $0x2c] sm:%s243] %v274
                  %v276 = vld [vmem:[%s250 + $0x60] sm:%s243]
                  %277 = vst [vmem:[%s251 + $0x30] sm:%s243] %v276
                  %v278 = vld [vmem:[%s250 + $0x68] sm:%s243]
                  %279 = vst [vmem:[%s251 + $0x34] sm:%s243] %v278
                  %v280 = vld [vmem:[%s250 + $0x70] sm:%s243]
                  %281 = vst [vmem:[%s251 + $0x38] sm:%s243] %v280
                  %v282 = vld [vmem:[%s250 + $0x78] sm:%s243]
                  %283 = vst [vmem:[%s251 + $0x3c] sm:%s243] %v282
                $region63: #{tpu_custom_call.1} parent=50 // loop_footer
                  %s249 = sadd.s32 1, %s245
                $region64: #{tpu_custom_call.1} parent=50 // loop_footer_branch
                  %244 = sbr.rel target = $region60
                $region65: #{tpu_custom_call.1} parent=50 // loop_exit
                  _
              $region51: #{tpu_custom_call.1} parent=35 // pred_fallthru
                _
            $region36: #{tpu_custom_call.1} parent=31 // pred_fallthru
              _
            // Predicated region
            $region37: #{tpu_custom_call.1} parent=31 // pred_check
              _
            $region38: #{tpu_custom_call.1} parent=31 // pred_check_branch
              %189 = sbr.rel (0) target = $region40
            $region39: #{tpu_custom_call.1} parent=31 // pred_region
              %s191 = ssub.s32 16, 1
              loop: start=0, step=1, limit=1
              $region41: #{tpu_custom_call.1} parent=39 // loop_pre_header
                _
              $region42: #{tpu_custom_call.1} parent=39 // loop_header
                %s193 = sphi 0, %s197
                %p194 = scmp.ge.s32.totalorder %s193, 1
                %s198 = sphi %s183, %s183
                %s199 = sphi %s178, %s178
              $region43: #{tpu_custom_call.1} parent=39 // loop_header_branch
                %196 = sbr.rel (%p194) target = $region47
              $region44: #{tpu_custom_call.1} parent=39 // loop_body
                %v200 = vld [vmem:[%s198] sm:%s191]
                %201 = vst [vmem:[%s199] sm:%s191] %v200
                %v202 = vld [vmem:[%s198 + $0x8] sm:%s191]
                %203 = vst [vmem:[%s199 + $0x4] sm:%s191] %v202
                %v204 = vld [vmem:[%s198 + $0x10] sm:%s191]
                %205 = vst [vmem:[%s199 + $0x8] sm:%s191] %v204
                %v206 = vld [vmem:[%s198 + $0x18] sm:%s191]
                %207 = vst [vmem:[%s199 + $0xc] sm:%s191] %v206
                %v208 = vld [vmem:[%s198 + $0x20] sm:%s191]
                %209 = vst [vmem:[%s199 + $0x10] sm:%s191] %v208
                %v210 = vld [vmem:[%s198 + $0x28] sm:%s191]
                %211 = vst [vmem:[%s199 + $0x14] sm:%s191] %v210
                %v212 = vld [vmem:[%s198 + $0x30] sm:%s191]
                %213 = vst [vmem:[%s199 + $0x18] sm:%s191] %v212
                %v214 = vld [vmem:[%s198 + $0x38] sm:%s191]
                %215 = vst [vmem:[%s199 + $0x1c] sm:%s191] %v214
                %v216 = vld [vmem:[%s198 + $0x40] sm:%s191]
                %217 = vst [vmem:[%s199 + $0x20] sm:%s191] %v216
                %v218 = vld [vmem:[%s198 + $0x48] sm:%s191]
                %219 = vst [vmem:[%s199 + $0x24] sm:%s191] %v218
                %v220 = vld [vmem:[%s198 + $0x50] sm:%s191]
                %221 = vst [vmem:[%s199 + $0x28] sm:%s191] %v220
                %v222 = vld [vmem:[%s198 + $0x58] sm:%s191]
                %223 = vst [vmem:[%s199 + $0x2c] sm:%s191] %v222
                %v224 = vld [vmem:[%s198 + $0x60] sm:%s191]
                %225 = vst [vmem:[%s199 + $0x30] sm:%s191] %v224
                %v226 = vld [vmem:[%s198 + $0x68] sm:%s191]
                %227 = vst [vmem:[%s199 + $0x34] sm:%s191] %v226
                %v228 = vld [vmem:[%s198 + $0x70] sm:%s191]
                %229 = vst [vmem:[%s199 + $0x38] sm:%s191] %v228
                %v230 = vld [vmem:[%s198 + $0x78] sm:%s191]
                %231 = vst [vmem:[%s199 + $0x3c] sm:%s191] %v230
              $region45: #{tpu_custom_call.1} parent=39 // loop_footer
                %s197 = sadd.s32 1, %s193
              $region46: #{tpu_custom_call.1} parent=39 // loop_footer_branch
                %192 = sbr.rel target = $region42
              $region47: #{tpu_custom_call.1} parent=39 // loop_exit
                _
            $region40: #{tpu_custom_call.1} parent=31 // pred_fallthru
              _
          $region32: #{tpu_custom_call.1} parent=27 // pred_fallthru
            _
          %284 = vnop
        $region28: #{tpu_custom_call.1} parent=23 // pred_fallthru
          _
        // Predicated region
        $region66: #{tpu_custom_call.1} parent=23 // pred_check
          %p285 = pneg %p94
        $region67: #{tpu_custom_call.1} parent=23 // pred_check_branch
          %287 = sbr.rel (%p285) target = $region69
        $region68: #{tpu_custom_call.1} parent=23 // pred_region
          %s288 = smul.u32 16, %s20
          %p289 = scmp.lt.s32.totalorder %s288, 31
          %s290 = scalar_select %p289, %s288, 31
          %s291 = smul.addr %s290, 8
          %s292 = scalar_lea.vmem %s2, %s291
          %s293 = smul.u32 16, %s20
        $region69: #{tpu_custom_call.1} parent=23 // pred_fallthru
          _
      $region24: #{tpu_custom_call.1} parent=5 // pred_fallthru
        _
      %p294 = scmp.le.s32.totalorder 1, %s13
      %p295 = scmp.lt.s32.totalorder %s13, 5
      %p296 = pnand %p294, %p295
      %p297 = pneg %p296
      // Predicated region
      $region70: #{tpu_custom_call.1} parent=5 // pred_check
        _
      $region71: #{tpu_custom_call.1} parent=5 // pred_check_branch
        %299 = sbr.rel (%p296) target = $region73
      $region72: #{tpu_custom_call.1} parent=5 // pred_region
        %s300 = ssub.s32 %s13, 1
        %s301 = sand.u32 %s40, 1
        %s302 = sand.u32 %s40, 1
        %s303 = smul.addr %s302, 64
        %s304 = scalar_lea.vmem [#allocation3], %s303
        // Predicated region
        $region74: #{tpu_custom_call.1} parent=72 // pred_check
          %p305 = pneg %p53
        $region75: #{tpu_custom_call.1} parent=72 // pred_check_branch
          %307 = sbr.rel (%p305) target = $region77
        $region76: #{tpu_custom_call.1} parent=72 // pred_region
          _
        $region77: #{tpu_custom_call.1} parent=72 // pred_fallthru
          _
        %s308 = sand.u32 %s40, 1
        %s309 = sand.u32 %s40, 1
        %s310 = smul.addr %s309, 64
        %s311 = scalar_lea.vmem [#allocation3], %s310
        %p312 = pneg %p53
        %p313 = pneg %p50
        %p314 = pneg %p74
        %p315 = pneg %p71
        %s316 = smul.u32 16, %s22
        %p317 = scmp.lt.s32.totalorder %s316, 31
        %s318 = scalar_select %p317, %s316, 31
        %s319 = smul.addr %s318, 8
        %s320 = scalar_lea.vmem %s2, %s319
        %p321 = pneg %p100
        %p322 = pneg %p97
        %p323 = pneg %p121
        %p324 = pneg %p118
        %p325 = pneg %p147
        %p326 = pneg %p144
        %s327 = sand.u32 %s134, 1
        %s328 = scalar_lea.sflag [#allocation5], %s327
        %s329 = sand.u32 %s134, 1
        %s330 = smul.addr %s329, 128
        %s331 = scalar_lea.vmem [#allocation4], %s330
        %s332 = smul.u32 16, %s22
        %s333 = smul.u32 16, %s22
        %p334 = scmp.lt.s32.totalorder %s333, 31
        %s335 = scalar_select %p334, %s333, 31
        %s336 = smul.addr %s335, 8
        %s337 = scalar_lea.vmem %s2, %s336
        %s338 = smul.u32 16, %s22
        %s339 = smul.u32 16, %s22
        %p341 = scmp.eq.s32.totalorder %s23, 0
        // Predicated region
        $region78: #{tpu_custom_call.1} parent=72 // pred_check
          %p342 = pneg %p341
        $region79: #{tpu_custom_call.1} parent=72 // pred_check_branch
          %344 = sbr.rel (%p342) target = $region81
        $region80: #{tpu_custom_call.1} parent=72 // pred_region
          %vm345 = vcmask 261120
          %346 = vst.msk [vmem:[#allocation2] sm:$0xff] %vm345, 0.0
          %347 = vst.msk [vmem:[#allocation2 + $0x8] sm:$0xff] %vm345, 0.0
          %348 = vst.msk [vmem:[#allocation2 + $0x10] sm:$0xff] %vm345, 0.0
          %349 = vst.msk [vmem:[#allocation2 + $0x18] sm:$0xff] %vm345, 0.0
          %350 = vst.msk [vmem:[#allocation2 + $0x20] sm:$0xff] %vm345, 0.0
          %351 = vst.msk [vmem:[#allocation2 + $0x28] sm:$0xff] %vm345, 0.0
          %352 = vst.msk [vmem:[#allocation2 + $0x30] sm:$0xff] %vm345, 0.0
          %353 = vst.msk [vmem:[#allocation2 + $0x38] sm:$0xff] %vm345, 0.0
          %354 = vst.msk [vmem:[#allocation2 + $0x40] sm:$0xff] %vm345, 0.0
          %355 = vst.msk [vmem:[#allocation2 + $0x48] sm:$0xff] %vm345, 0.0
          %356 = vst.msk [vmem:[#allocation2 + $0x50] sm:$0xff] %vm345, 0.0
          %357 = vst.msk [vmem:[#allocation2 + $0x58] sm:$0xff] %vm345, 0.0
          %358 = vst.msk [vmem:[#allocation2 + $0x60] sm:$0xff] %vm345, 0.0
          %359 = vst.msk [vmem:[#allocation2 + $0x68] sm:$0xff] %vm345, 0.0
          %360 = vst.msk [vmem:[#allocation2 + $0x70] sm:$0xff] %vm345, 0.0
          %361 = vst.msk [vmem:[#allocation2 + $0x78] sm:$0xff] %vm345, 0.0
        $region81: #{tpu_custom_call.1} parent=72 // pred_fallthru
          _
        %s362 = smul.u32 %s23, 128
        %s363 = sshra.s32 %s362, 3
        %s364 = sand.u32 %s362, 7
        %s365 = smul.addr %s363, 4
        %s366 = scalar_lea.vmem %s1, %s365
        %v367 = vld [vmem:[%s366] sm:$0xf]
        %v368 = vld [vmem:[%s366 + $0x4] sm:$0xf]
        %v369 = vld [vmem:[%s366 + $0x8] sm:$0xf]
        %v370 = vld [vmem:[%s366 + $0xc] sm:$0xf]
        %v371 = vld [vmem:[%s366 + $0x10] sm:$0xf]
        %v372 = vld [vmem:[%s366 + $0x14] sm:$0xf]
        %v373 = vld [vmem:[%s366 + $0x18] sm:$0xf]
        %v374 = vld [vmem:[%s366 + $0x1c] sm:$0xf]
        %v375 = vld [vmem:[%s366 + $0x20] sm:$0xf]
        %v376 = vld [vmem:[%s366 + $0x24] sm:$0xf]
        %v377 = vld [vmem:[%s366 + $0x28] sm:$0xf]
        %v378 = vld [vmem:[%s366 + $0x2c] sm:$0xf]
        %v379 = vld [vmem:[%s366 + $0x30] sm:$0xf]
        %v380 = vld [vmem:[%s366 + $0x34] sm:$0xf]
        %v381 = vld [vmem:[%s366 + $0x38] sm:$0xf]
        %v382 = vld [vmem:[%s366 + $0x3c] sm:$0xf]
        %v383 = vld [vmem:[#allocation2] sm:$0xff]
        %v384 = vld [vmem:[#allocation2 + $0x8] sm:$0xff]
        %v385 = vld [vmem:[#allocation2 + $0x10] sm:$0xff]
        %v386 = vld [vmem:[#allocation2 + $0x18] sm:$0xff]
        %v387 = vld [vmem:[#allocation2 + $0x20] sm:$0xff]
        %v388 = vld [vmem:[#allocation2 + $0x28] sm:$0xff]
        %v389 = vld [vmem:[#allocation2 + $0x30] sm:$0xff]
        %v390 = vld [vmem:[#allocation2 + $0x38] sm:$0xff]
        %v391 = vld [vmem:[#allocation2 + $0x40] sm:$0xff]
        %v392 = vld [vmem:[#allocation2 + $0x48] sm:$0xff]
        %v393 = vld [vmem:[#allocation2 + $0x50] sm:$0xff]
        %v394 = vld [vmem:[#allocation2 + $0x58] sm:$0xff]
        %v395 = vld [vmem:[#allocation2 + $0x60] sm:$0xff]
        %v396 = vld [vmem:[#allocation2 + $0x68] sm:$0xff]
        %v397 = vld [vmem:[#allocation2 + $0x70] sm:$0xff]
        %v398 = vld [vmem:[#allocation2 + $0x78] sm:$0xff]
        %v399 = vld [vmem:[%s304] sm:$0xf]
        %v400 = vld [vmem:[%s304 + $0x4] sm:$0xf]
        %v401 = vld [vmem:[%s304 + $0x8] sm:$0xf]
        %v402 = vld [vmem:[%s304 + $0xc] sm:$0xf]
        %v403 = vld [vmem:[%s304 + $0x10] sm:$0xf]
        %v404 = vld [vmem:[%s304 + $0x14] sm:$0xf]
        %v405 = vld [vmem:[%s304 + $0x18] sm:$0xf]
        %v406 = vld [vmem:[%s304 + $0x1c] sm:$0xf]
        %v407 = vld [vmem:[%s304 + $0x20] sm:$0xf]
        %v408 = vld [vmem:[%s304 + $0x24] sm:$0xf]
        %v409 = vld [vmem:[%s304 + $0x28] sm:$0xf]
        %v410 = vld [vmem:[%s304 + $0x2c] sm:$0xf]
        %v411 = vld [vmem:[%s304 + $0x30] sm:$0xf]
        %v412 = vld [vmem:[%s304 + $0x34] sm:$0xf]
        %v413 = vld [vmem:[%s304 + $0x38] sm:$0xf]
        %v414 = vld [vmem:[%s304 + $0x3c] sm:$0xf]
        %v431 = vunpack.c.l.b16 %v399
        %v432 = vunpack.c.l.b16 %v400
        %v433 = vunpack.c.l.b16 %v401
        %v434 = vunpack.c.l.b16 %v402
        %v435 = vunpack.c.l.b16 %v403
        %v436 = vunpack.c.l.b16 %v404
        %v437 = vunpack.c.l.b16 %v405
        %v438 = vunpack.c.l.b16 %v406
        %v439 = vunpack.c.l.b16 %v407
        %v440 = vunpack.c.l.b16 %v408
        %v441 = vunpack.c.l.b16 %v409
        %v442 = vunpack.c.l.b16 %v410
        %v443 = vunpack.c.l.b16 %v411
        %v444 = vunpack.c.l.b16 %v412
        %v445 = vunpack.c.l.b16 %v413
        %v446 = vunpack.c.l.b16 %v414
        %v447 = vpack.c.b16 %v432, %v431
        %v448 = vpack.c.b16 %v434, %v433
        %v449 = vpack.c.b16 %v436, %v435
        %v450 = vpack.c.b16 %v438, %v437
        %v451 = vpack.c.b16 %v440, %v439
        %v452 = vpack.c.b16 %v442, %v441
        %v453 = vpack.c.b16 %v444, %v443
        %v454 = vpack.c.b16 %v446, %v445
        %v479 = vunpack.c.l.b16 %v367
        %v480 = vunpack.c.l.b16 %v368
        %v481 = vunpack.c.l.b16 %v369
        %v482 = vunpack.c.l.b16 %v370
        %v483 = vunpack.c.l.b16 %v371
        %v484 = vunpack.c.l.b16 %v372
        %v485 = vunpack.c.l.b16 %v373
        %v486 = vunpack.c.l.b16 %v374
        %v487 = vunpack.c.l.b16 %v375
        %v488 = vunpack.c.l.b16 %v376
        %v489 = vunpack.c.l.b16 %v377
        %v490 = vunpack.c.l.b16 %v378
        %v491 = vunpack.c.l.b16 %v379
        %v492 = vunpack.c.l.b16 %v380
        %v493 = vunpack.c.l.b16 %v381
        %v494 = vunpack.c.l.b16 %v382
        %v495 = vpack.c.b16 %v480, %v479
        %v496 = vpack.c.b16 %v482, %v481
        %v497 = vpack.c.b16 %v484, %v483
        %v498 = vpack.c.b16 %v486, %v485
        %v499 = vpack.c.b16 %v488, %v487
        %v500 = vpack.c.b16 %v490, %v489
        %v501 = vpack.c.b16 %v492, %v491
        %v502 = vpack.c.b16 %v494, %v493
        %511 = vmatprep.subr.bf16.mxu0 0
        %512 = vmatpush1.bf16.msra.mxu0 %v502
        %513 = vmatprep.subr.bf16.mxu0 0
        %514 = vmatpush1.bf16.msra.mxu0 %v501
        %515 = vmatprep.subr.bf16.mxu0 0
        %516 = vmatpush1.bf16.msra.mxu0 %v500
        %517 = vmatprep.subr.bf16.mxu0 0
        %518 = vmatpush1.bf16.msra.mxu0 %v499
        %519 = vmatprep.subr.bf16.mxu0 0
        %520 = vmatpush1.bf16.msra.mxu0 %v498
        %521 = vmatprep.subr.bf16.mxu0 0
        %522 = vmatpush1.bf16.msra.mxu0 %v497
        %523 = vmatprep.subr.bf16.mxu0 0
        %524 = vmatpush1.bf16.msra.mxu0 %v496
        %525 = vmatprep.subr.bf16.mxu0 0
        %526 = vmatpush1.bf16.msra.mxu0 %v495
        %527 = vmatprep.subr.bf16.mxu0 0
        %528 = vmatpush2.bf16.msra.mxu0 0
        %529 = vmatprep.subr.bf16.mxu0 0
        %530 = vmatpush2.bf16.msra.mxu0 0
        %531 = vmatprep.subr.bf16.mxu0 0
        %532 = vmatpush2.bf16.msra.mxu0 0
        %533 = vmatprep.subr.bf16.mxu0 0
        %534 = vmatpush2.bf16.msra.mxu0 0
        %535 = vmatprep.subr.bf16.mxu0 0
        %536 = vmatpush2.bf16.msra.mxu0 0
        %537 = vmatprep.subr.bf16.mxu0 0
        %538 = vmatpush2.bf16.msra.mxu0 0
        %539 = vmatprep.subr.bf16.mxu0 0
        %540 = vmatpush2.bf16.msra.mxu0 0
        %541 = vmatprep.subr.bf16.mxu0 0
        %542 = vmatpush2.bf16.msra.mxu0 0
        %543 = vmatprep.mubr.bf16.mxu0 0
        %544 = vmatmul.mubr.bf16.gmra.mxu0 %v447
        %v545 = vpop.f32.mrf.mxu0
        %v546 = vadd.f32 0.0, %v545
        %v547 = vpop.f32.mrf.mxu0
        %v548 = vpop.f32.mrf.mxu0
        %v549 = vadd.f32 0.0, %v548
        %v550 = vpop.f32.mrf.mxu0
        %551 = vmatprep.mubr.bf16.mxu0 0
        %552 = vmatmul.mubr.bf16.gmra.mxu0 %v448
        %v553 = vpop.f32.mrf.mxu0
        %v554 = vadd.f32 0.0, %v553
        %v555 = vpop.f32.mrf.mxu0
        %v556 = vpop.f32.mrf.mxu0
        %v557 = vadd.f32 0.0, %v556
        %v558 = vpop.f32.mrf.mxu0
        %559 = vmatprep.mubr.bf16.mxu0 0
        %560 = vmatmul.mubr.bf16.gmra.mxu0 %v449
        %v561 = vpop.f32.mrf.mxu0
        %v562 = vadd.f32 0.0, %v561
        %v563 = vpop.f32.mrf.mxu0
        %v564 = vpop.f32.mrf.mxu0
        %v565 = vadd.f32 0.0, %v564
        %v566 = vpop.f32.mrf.mxu0
        %567 = vmatprep.mubr.bf16.mxu0 0
        %568 = vmatmul.mubr.bf16.gmra.mxu0 %v450
        %v569 = vpop.f32.mrf.mxu0
        %v570 = vadd.f32 0.0, %v569
        %v571 = vpop.f32.mrf.mxu0
        %v572 = vpop.f32.mrf.mxu0
        %v573 = vadd.f32 0.0, %v572
        %v574 = vpop.f32.mrf.mxu0
        %575 = vmatprep.mubr.bf16.mxu0 0
        %576 = vmatmul.mubr.bf16.gmra.mxu0 %v451
        %v577 = vpop.f32.mrf.mxu0
        %v578 = vadd.f32 0.0, %v577
        %v579 = vpop.f32.mrf.mxu0
        %v580 = vpop.f32.mrf.mxu0
        %v581 = vadd.f32 0.0, %v580
        %v582 = vpop.f32.mrf.mxu0
        %583 = vmatprep.mubr.bf16.mxu0 0
        %584 = vmatmul.mubr.bf16.gmra.mxu0 %v452
        %v585 = vpop.f32.mrf.mxu0
        %v586 = vadd.f32 0.0, %v585
        %v587 = vpop.f32.mrf.mxu0
        %v588 = vpop.f32.mrf.mxu0
        %v589 = vadd.f32 0.0, %v588
        %v590 = vpop.f32.mrf.mxu0
        %591 = vmatprep.mubr.bf16.mxu0 0
        %592 = vmatmul.mubr.bf16.gmra.mxu0 %v453
        %v593 = vpop.f32.mrf.mxu0
        %v594 = vadd.f32 0.0, %v593
        %v595 = vpop.f32.mrf.mxu0
        %v596 = vpop.f32.mrf.mxu0
        %v597 = vadd.f32 0.0, %v596
        %v598 = vpop.f32.mrf.mxu0
        %599 = vmatprep.mubr.bf16.mxu0 0
        %600 = vmatmul.mubr.bf16.gmra.mxu0 %v454
        %v601 = vpop.f32.mrf.mxu0
        %v602 = vadd.f32 0.0, %v601
        %v603 = vpop.f32.mrf.mxu0
        %v604 = vpop.f32.mrf.mxu0
        %v605 = vadd.f32 0.0, %v604
        %v606 = vpop.f32.mrf.mxu0
        %607 = vdwg.mxu0
        %v608 = vadd.f32 %v383, %v546
        %v609 = vadd.f32 %v384, %v549
        %v610 = vadd.f32 %v385, %v554
        %v611 = vadd.f32 %v386, %v557
        %v612 = vadd.f32 %v387, %v562
        %v613 = vadd.f32 %v388, %v565
        %v614 = vadd.f32 %v389, %v570
        %v615 = vadd.f32 %v390, %v573
        %v616 = vadd.f32 %v391, %v578
        %v617 = vadd.f32 %v392, %v581
        %v618 = vadd.f32 %v393, %v586
        %v619 = vadd.f32 %v394, %v589
        %v620 = vadd.f32 %v395, %v594
        %v621 = vadd.f32 %v396, %v597
        %v622 = vadd.f32 %v397, %v602
        %v623 = vadd.f32 %v398, %v605
        %vm624 = vcmask 261120
        %625 = vst.msk [vmem:[#allocation2] sm:$0xff] %vm624, %v608
        %626 = vst.msk [vmem:[#allocation2 + $0x8] sm:$0xff] %vm624, %v609
        %627 = vst.msk [vmem:[#allocation2 + $0x10] sm:$0xff] %vm624, %v610
        %628 = vst.msk [vmem:[#allocation2 + $0x18] sm:$0xff] %vm624, %v611
        %629 = vst.msk [vmem:[#allocation2 + $0x20] sm:$0xff] %vm624, %v612
        %630 = vst.msk [vmem:[#allocation2 + $0x28] sm:$0xff] %vm624, %v613
        %631 = vst.msk [vmem:[#allocation2 + $0x30] sm:$0xff] %vm624, %v614
        %632 = vst.msk [vmem:[#allocation2 + $0x38] sm:$0xff] %vm624, %v615
        %633 = vst.msk [vmem:[#allocation2 + $0x40] sm:$0xff] %vm624, %v616
        %634 = vst.msk [vmem:[#allocation2 + $0x48] sm:$0xff] %vm624, %v617
        %635 = vst.msk [vmem:[#allocation2 + $0x50] sm:$0xff] %vm624, %v618
        %636 = vst.msk [vmem:[#allocation2 + $0x58] sm:$0xff] %vm624, %v619
        %637 = vst.msk [vmem:[#allocation2 + $0x60] sm:$0xff] %vm624, %v620
        %638 = vst.msk [vmem:[#allocation2 + $0x68] sm:$0xff] %vm624, %v621
        %639 = vst.msk [vmem:[#allocation2 + $0x70] sm:$0xff] %vm624, %v622
        %640 = vst.msk [vmem:[#allocation2 + $0x78] sm:$0xff] %vm624, %v623
        %p641 = scmp.eq.s32.totalorder %s23, 1
        // Predicated region
        $region82: #{tpu_custom_call.1} parent=72 // pred_check
          %p642 = pneg %p641
        $region83: #{tpu_custom_call.1} parent=72 // pred_check_branch
          %644 = sbr.rel (%p642) target = $region85
        $region84: #{tpu_custom_call.1} parent=72 // pred_region
          %v645 = vld [vmem:[#allocation2] sm:$0xff]
          %v646 = vld [vmem:[#allocation2 + $0x8] sm:$0xff]
          %v647 = vld [vmem:[#allocation2 + $0x10] sm:$0xff]
          %v648 = vld [vmem:[#allocation2 + $0x18] sm:$0xff]
          %v649 = vld [vmem:[#allocation2 + $0x20] sm:$0xff]
          %v650 = vld [vmem:[#allocation2 + $0x28] sm:$0xff]
          %v651 = vld [vmem:[#allocation2 + $0x30] sm:$0xff]
          %v652 = vld [vmem:[#allocation2 + $0x38] sm:$0xff]
          %v653 = vld [vmem:[#allocation2 + $0x40] sm:$0xff]
          %v654 = vld [vmem:[#allocation2 + $0x48] sm:$0xff]
          %v655 = vld [vmem:[#allocation2 + $0x50] sm:$0xff]
          %v656 = vld [vmem:[#allocation2 + $0x58] sm:$0xff]
          %v657 = vld [vmem:[#allocation2 + $0x60] sm:$0xff]
          %v658 = vld [vmem:[#allocation2 + $0x68] sm:$0xff]
          %v659 = vld [vmem:[#allocation2 + $0x70] sm:$0xff]
          %v660 = vld [vmem:[#allocation2 + $0x78] sm:$0xff]
          %v661 = vld [vmem:[%s337] sm:$0xff]
          %v662 = vld [vmem:[%s337 + $0x8] sm:$0xff]
          %v663 = vld [vmem:[%s337 + $0x10] sm:$0xff]
          %v664 = vld [vmem:[%s337 + $0x18] sm:$0xff]
          %v665 = vld [vmem:[%s337 + $0x20] sm:$0xff]
          %v666 = vld [vmem:[%s337 + $0x28] sm:$0xff]
          %v667 = vld [vmem:[%s337 + $0x30] sm:$0xff]
          %v668 = vld [vmem:[%s337 + $0x38] sm:$0xff]
          %v669 = vld [vmem:[%s337 + $0x40] sm:$0xff]
          %v670 = vld [vmem:[%s337 + $0x48] sm:$0xff]
          %v671 = vld [vmem:[%s337 + $0x50] sm:$0xff]
          %v672 = vld [vmem:[%s337 + $0x58] sm:$0xff]
          %v673 = vld [vmem:[%s337 + $0x60] sm:$0xff]
          %v674 = vld [vmem:[%s337 + $0x68] sm:$0xff]
          %v675 = vld [vmem:[%s337 + $0x70] sm:$0xff]
          %v676 = vld [vmem:[%s337 + $0x78] sm:$0xff]
          %678 = vset.pattern.permute.xlu0 0
          %679 = vperm.xlu0 %678, %v661
          %v680 = vpop.permute.xlu0 %679
          %683 = vset.pattern.permute.xlu0 0
          %684 = vperm.xlu0 %683, %v662
          %v685 = vpop.permute.xlu0 %684
          %688 = vset.pattern.permute.xlu0 0
          %689 = vperm.xlu0 %688, %v663
          %v690 = vpop.permute.xlu0 %689
          %693 = vset.pattern.permute.xlu0 0
          %694 = vperm.xlu0 %693, %v664
          %v695 = vpop.permute.xlu0 %694
          %698 = vset.pattern.permute.xlu0 0
          %699 = vperm.xlu0 %698, %v665
          %v700 = vpop.permute.xlu0 %699
          %703 = vset.pattern.permute.xlu0 0
          %704 = vperm.xlu0 %703, %v666
          %v705 = vpop.permute.xlu0 %704
          %708 = vset.pattern.permute.xlu0 0
          %709 = vperm.xlu0 %708, %v667
          %v710 = vpop.permute.xlu0 %709
          %713 = vset.pattern.permute.xlu0 0
          %714 = vperm.xlu0 %713, %v668
          %v715 = vpop.permute.xlu0 %714
          %718 = vset.pattern.permute.xlu0 0
          %719 = vperm.xlu0 %718, %v669
          %v720 = vpop.permute.xlu0 %719
          %723 = vset.pattern.permute.xlu0 0
          %724 = vperm.xlu0 %723, %v670
          %v725 = vpop.permute.xlu0 %724
          %728 = vset.pattern.permute.xlu0 0
          %729 = vperm.xlu0 %728, %v671
          %v730 = vpop.permute.xlu0 %729
          %733 = vset.pattern.permute.xlu0 0
          %734 = vperm.xlu0 %733, %v672
          %v735 = vpop.permute.xlu0 %734
          %738 = vset.pattern.permute.xlu0 0
          %739 = vperm.xlu0 %738, %v673
          %v740 = vpop.permute.xlu0 %739
          %743 = vset.pattern.permute.xlu0 0
          %744 = vperm.xlu0 %743, %v674
          %v745 = vpop.permute.xlu0 %744
          %748 = vset.pattern.permute.xlu0 0
          %749 = vperm.xlu0 %748, %v675
          %v750 = vpop.permute.xlu0 %749
          %753 = vset.pattern.permute.xlu0 0
          %754 = vperm.xlu0 %753, %v676
          %v755 = vpop.permute.xlu0 %754
          %v757 = vmul.f32 %v645, %v680
          %v758 = vmul.f32 %v646, %v685
          %v759 = vmul.f32 %v647, %v690
          %v760 = vmul.f32 %v648, %v695
          %v761 = vmul.f32 %v649, %v700
          %v762 = vmul.f32 %v650, %v705
          %v763 = vmul.f32 %v651, %v710
          %v764 = vmul.f32 %v652, %v715
          %v765 = vmul.f32 %v653, %v720
          %v766 = vmul.f32 %v654, %v725
          %v767 = vmul.f32 %v655, %v730
          %v768 = vmul.f32 %v656, %v735
          %v769 = vmul.f32 %v657, %v740
          %v770 = vmul.f32 %v658, %v745
          %v771 = vmul.f32 %v659, %v750
          %v772 = vmul.f32 %v660, %v755
          %v773 = vld [vmem:[%s3] sm:$0xff]
          %v774 = vld [vmem:[%s3 + $0x8] sm:$0xff]
          %v775 = vld [vmem:[%s3 + $0x10] sm:$0xff]
          %v776 = vld [vmem:[%s3 + $0x18] sm:$0xff]
          %v778 = vsel %vm624, %v757, 0
          %v781 = vsel %vm624, %v758, 0
          %v784 = vsel %vm624, %v759, 0
          %v787 = vsel %vm624, %v760, 0
          %v790 = vsel %vm624, %v761, 0
          %v793 = vsel %vm624, %v762, 0
          %v796 = vsel %vm624, %v763, 0
          %v799 = vsel %vm624, %v764, 0
          %v802 = vsel %vm624, %v765, 0
          %v805 = vsel %vm624, %v766, 0
          %v808 = vsel %vm624, %v767, 0
          %v811 = vsel %vm624, %v768, 0
          %v814 = vsel %vm624, %v769, 0
          %v817 = vsel %vm624, %v770, 0
          %v820 = vsel %vm624, %v771, 0
          %v823 = vsel %vm624, %v772, 0
          %825 = vmatprep.subr.mxu0 0.0
          %826 = vmatpush1.msra.mxu0 0.0
          %827 = vmatprep.subr.mxu0 0.0
          %828 = vmatpush1.msra.mxu0 0.0
          %829 = vmatprep.subr.mxu0 0.0
          %830 = vmatpush1.msra.mxu0 0.0
          %831 = vmatprep.subr.mxu0 0.0
          %832 = vmatpush1.msra.mxu0 0.0
          %833 = vmatprep.subr.mxu0 0.0
          %834 = vmatpush1.msra.mxu0 0.0
          %835 = vmatprep.subr.mxu0 0.0
          %836 = vmatpush1.msra.mxu0 0.0
          %837 = vmatprep.subr.mxu0 0.0
          %838 = vmatpush1.msra.mxu0 0.0
          %839 = vmatprep.subr.mxu0 0.0
          %840 = vmatpush1.msra.mxu0 0.0
          %841 = vmatprep.subr.mxu0 0.0
          %842 = vmatpush1.msra.mxu0 0.0
          %843 = vmatprep.subr.mxu0 0.0
          %844 = vmatpush1.msra.mxu0 0.0
          %845 = vmatprep.subr.mxu0 0.0
          %846 = vmatpush1.msra.mxu0 0.0
          %847 = vmatprep.subr.mxu0 0.0
          %848 = vmatpush1.msra.mxu0 0.0
          %849 = vmatprep.subr.mxu0 0.0
          %850 = vmatpush1.msra.mxu0 %v776
          %851 = vmatprep.subr.mxu0 0.0
          %852 = vmatpush1.msra.mxu0 %v775
          %853 = vmatprep.subr.mxu0 0.0
          %854 = vmatpush1.msra.mxu0 %v774
          %855 = vmatprep.subr.mxu0 0.0
          %856 = vmatpush1.msra.mxu0 %v773
          %857 = vmatprep.subr.mxu0 0.0
          %858 = vmatpush2.msra.mxu0 0.0
          %859 = vmatprep.subr.mxu0 0.0
          %860 = vmatpush2.msra.mxu0 0.0
          %861 = vmatprep.subr.mxu0 0.0
          %862 = vmatpush2.msra.mxu0 0.0
          %863 = vmatprep.subr.mxu0 0.0
          %864 = vmatpush2.msra.mxu0 0.0
          %865 = vmatprep.subr.mxu0 0.0
          %866 = vmatpush2.msra.mxu0 0.0
          %867 = vmatprep.subr.mxu0 0.0
          %868 = vmatpush2.msra.mxu0 0.0
          %869 = vmatprep.subr.mxu0 0.0
          %870 = vmatpush2.msra.mxu0 0.0
          %871 = vmatprep.subr.mxu0 0.0
          %872 = vmatpush2.msra.mxu0 0.0
          %873 = vmatprep.subr.mxu0 0.0
          %874 = vmatpush2.msra.mxu0 0.0
          %875 = vmatprep.subr.mxu0 0.0
          %876 = vmatpush2.msra.mxu0 0.0
          %877 = vmatprep.subr.mxu0 0.0
          %878 = vmatpush2.msra.mxu0 0.0
          %879 = vmatprep.subr.mxu0 0.0
          %880 = vmatpush2.msra.mxu0 0.0
          %881 = vmatprep.subr.mxu0 0.0
          %882 = vmatpush2.msra.mxu0 0.0
          %883 = vmatprep.subr.mxu0 0.0
          %884 = vmatpush2.msra.mxu0 0.0
          %885 = vmatprep.subr.mxu0 0.0
          %886 = vmatpush2.msra.mxu0 0.0
          %887 = vmatprep.subr.mxu0 0.0
          %888 = vmatpush2.msra.mxu0 0.0
          %889 = vmatprep.mubr.f32.mxu0 0.0
          %890 = vmatmul.mubr.f32.gmra.mxu0 %v778
          %v891 = vpop.f32.mrf.mxu0
          %v892 = vadd.f32 0.0, %v891
          %v893 = vpop.f32.mrf.mxu0
          %894 = vmatprep.mubr.f32.mxu0 0.0
          %895 = vmatmul.mubr.f32.gmra.mxu0 %v781
          %v896 = vpop.f32.mrf.mxu0
          %v897 = vadd.f32 0.0, %v896
          %v898 = vpop.f32.mrf.mxu0
          %899 = vmatprep.mubr.f32.mxu0 0.0
          %900 = vmatmul.mubr.f32.gmra.mxu0 %v784
          %v901 = vpop.f32.mrf.mxu0
          %v902 = vadd.f32 0.0, %v901
          %v903 = vpop.f32.mrf.mxu0
          %904 = vmatprep.mubr.f32.mxu0 0.0
          %905 = vmatmul.mubr.f32.gmra.mxu0 %v787
          %v906 = vpop.f32.mrf.mxu0
          %v907 = vadd.f32 0.0, %v906
          %v908 = vpop.f32.mrf.mxu0
          %909 = vmatprep.mubr.f32.mxu0 0.0
          %910 = vmatmul.mubr.f32.gmra.mxu0 %v790
          %v911 = vpop.f32.mrf.mxu0
          %v912 = vadd.f32 0.0, %v911
          %v913 = vpop.f32.mrf.mxu0
          %914 = vmatprep.mubr.f32.mxu0 0.0
          %915 = vmatmul.mubr.f32.gmra.mxu0 %v793
          %v916 = vpop.f32.mrf.mxu0
          %v917 = vadd.f32 0.0, %v916
          %v918 = vpop.f32.mrf.mxu0
          %919 = vmatprep.mubr.f32.mxu0 0.0
          %920 = vmatmul.mubr.f32.gmra.mxu0 %v796
          %v921 = vpop.f32.mrf.mxu0
          %v922 = vadd.f32 0.0, %v921
          %v923 = vpop.f32.mrf.mxu0
          %924 = vmatprep.mubr.f32.mxu0 0.0
          %925 = vmatmul.mubr.f32.gmra.mxu0 %v799
          %v926 = vpop.f32.mrf.mxu0
          %v927 = vadd.f32 0.0, %v926
          %v928 = vpop.f32.mrf.mxu0
          %929 = vmatprep.mubr.f32.mxu0 0.0
          %930 = vmatmul.mubr.f32.gmra.mxu0 %v802
          %v931 = vpop.f32.mrf.mxu0
          %v932 = vadd.f32 0.0, %v931
          %v933 = vpop.f32.mrf.mxu0
          %934 = vmatprep.mubr.f32.mxu0 0.0
          %935 = vmatmul.mubr.f32.gmra.mxu0 %v805
          %v936 = vpop.f32.mrf.mxu0
          %v937 = vadd.f32 0.0, %v936
          %v938 = vpop.f32.mrf.mxu0
          %939 = vmatprep.mubr.f32.mxu0 0.0
          %940 = vmatmul.mubr.f32.gmra.mxu0 %v808
          %v941 = vpop.f32.mrf.mxu0
          %v942 = vadd.f32 0.0, %v941
          %v943 = vpop.f32.mrf.mxu0
          %944 = vmatprep.mubr.f32.mxu0 0.0
          %945 = vmatmul.mubr.f32.gmra.mxu0 %v811
          %v946 = vpop.f32.mrf.mxu0
          %v947 = vadd.f32 0.0, %v946
          %v948 = vpop.f32.mrf.mxu0
          %949 = vmatprep.mubr.f32.mxu0 0.0
          %950 = vmatmul.mubr.f32.gmra.mxu0 %v814
          %v951 = vpop.f32.mrf.mxu0
          %v952 = vadd.f32 0.0, %v951
          %v953 = vpop.f32.mrf.mxu0
          %954 = vmatprep.mubr.f32.mxu0 0.0
          %955 = vmatmul.mubr.f32.gmra.mxu0 %v817
          %v956 = vpop.f32.mrf.mxu0
          %v957 = vadd.f32 0.0, %v956
          %v958 = vpop.f32.mrf.mxu0
          %959 = vmatprep.mubr.f32.mxu0 0.0
          %960 = vmatmul.mubr.f32.gmra.mxu0 %v820
          %v961 = vpop.f32.mrf.mxu0
          %v962 = vadd.f32 0.0, %v961
          %v963 = vpop.f32.mrf.mxu0
          %964 = vmatprep.mubr.f32.mxu0 0.0
          %965 = vmatmul.mubr.f32.gmra.mxu0 %v823
          %v966 = vpop.f32.mrf.mxu0
          %v967 = vadd.f32 0.0, %v966
          %v968 = vpop.f32.mrf.mxu0
          %969 = vdwg.mxu0
          %vm970 = vcmask 31744
          %v971 = vsel %vm970, %v892, -inf
          %972 = vmax.xlane.f32.xlu0 %v971
          %v973 = vpop.xlane.xlu0 %972
          %v974 = vsel %vm970, %v897, -inf
          %975 = vmax.xlane.f32.xlu0 %v974
          %v976 = vpop.xlane.xlu0 %975
          %v977 = vsel %vm970, %v902, -inf
          %978 = vmax.xlane.f32.xlu0 %v977
          %v979 = vpop.xlane.xlu0 %978
          %v980 = vsel %vm970, %v907, -inf
          %981 = vmax.xlane.f32.xlu0 %v980
          %v982 = vpop.xlane.xlu0 %981
          %v983 = vsel %vm970, %v912, -inf
          %984 = vmax.xlane.f32.xlu0 %v983
          %v985 = vpop.xlane.xlu0 %984
          %v986 = vsel %vm970, %v917, -inf
          %987 = vmax.xlane.f32.xlu0 %v986
          %v988 = vpop.xlane.xlu0 %987
          %v989 = vsel %vm970, %v922, -inf
          %990 = vmax.xlane.f32.xlu0 %v989
          %v991 = vpop.xlane.xlu0 %990
          %v992 = vsel %vm970, %v927, -inf
          %993 = vmax.xlane.f32.xlu0 %v992
          %v994 = vpop.xlane.xlu0 %993
          %v995 = vsel %vm970, %v932, -inf
          %996 = vmax.xlane.f32.xlu0 %v995
          %v997 = vpop.xlane.xlu0 %996
          %v998 = vsel %vm970, %v937, -inf
          %999 = vmax.xlane.f32.xlu0 %v998
          %v1000 = vpop.xlane.xlu0 %999
          %v1001 = vsel %vm970, %v942, -inf
          %1002 = vmax.xlane.f32.xlu0 %v1001
          %v1003 = vpop.xlane.xlu0 %1002
          %v1004 = vsel %vm970, %v947, -inf
          %1005 = vmax.xlane.f32.xlu0 %v1004
          %v1006 = vpop.xlane.xlu0 %1005
          %v1007 = vsel %vm970, %v952, -inf
          %1008 = vmax.xlane.f32.xlu0 %v1007
          %v1009 = vpop.xlane.xlu0 %1008
          %v1010 = vsel %vm970, %v957, -inf
          %1011 = vmax.xlane.f32.xlu0 %v1010
          %v1012 = vpop.xlane.xlu0 %1011
          %v1013 = vsel %vm970, %v962, -inf
          %1014 = vmax.xlane.f32.xlu0 %v1013
          %v1015 = vpop.xlane.xlu0 %1014
          %v1016 = vsel %vm970, %v967, -inf
          %1017 = vmax.xlane.f32.xlu0 %v1016
          %v1018 = vpop.xlane.xlu0 %1017
          %v1019 = vlaneseq
          %v1020 = vand.u32 %v1019, 127
          %vm1021 = vcmp.eq.f32.partialorder %v892, %v973
          %vm1022 = vcmp.eq.f32.partialorder %v897, %v976
          %vm1023 = vcmp.eq.f32.partialorder %v902, %v979
          %vm1024 = vcmp.eq.f32.partialorder %v907, %v982
          %vm1025 = vcmp.eq.f32.partialorder %v912, %v985
          %vm1026 = vcmp.eq.f32.partialorder %v917, %v988
          %vm1027 = vcmp.eq.f32.partialorder %v922, %v991
          %vm1028 = vcmp.eq.f32.partialorder %v927, %v994
          %vm1029 = vcmp.eq.f32.partialorder %v932, %v997
          %vm1030 = vcmp.eq.f32.partialorder %v937, %v1000
          %vm1031 = vcmp.eq.f32.partialorder %v942, %v1003
          %vm1032 = vcmp.eq.f32.partialorder %v947, %v1006
          %vm1033 = vcmp.eq.f32.partialorder %v952, %v1009
          %vm1034 = vcmp.eq.f32.partialorder %v957, %v1012
          %vm1035 = vcmp.eq.f32.partialorder %v962, %v1015
          %vm1036 = vcmp.eq.f32.partialorder %v967, %v1018
          %v1037 = vsel %vm1021, %v1020, 4
          %v1038 = vsel %vm1022, %v1020, 4
          %v1039 = vsel %vm1023, %v1020, 4
          %v1040 = vsel %vm1024, %v1020, 4
          %v1041 = vsel %vm1025, %v1020, 4
          %v1042 = vsel %vm1026, %v1020, 4
          %v1043 = vsel %vm1027, %v1020, 4
          %v1044 = vsel %vm1028, %v1020, 4
          %v1045 = vsel %vm1029, %v1020, 4
          %v1046 = vsel %vm1030, %v1020, 4
          %v1047 = vsel %vm1031, %v1020, 4
          %v1048 = vsel %vm1032, %v1020, 4
          %v1049 = vsel %vm1033, %v1020, 4
          %v1050 = vsel %vm1034, %v1020, 4
          %v1051 = vsel %vm1035, %v1020, 4
          %v1052 = vsel %vm1036, %v1020, 4
          %v1053 = vsel %vm970, %v1037, 2147483647
          %v1054 = vand.u32 %v1053, 65535
          %v1055 = vshra.s32 %v1053, 16
          %v1056 = vcvt.s32.f32 %v1054
          %v1057 = vcvt.s32.f32 %v1055
          %1058 = vmin.xlane.f32.xlu0 %v1057
          %v1059 = vpop.xlane.xlu0 %1058
          %vm1060 = vcmp.eq.f32.partialorder %v1057, %v1059
          %v1061 = vsel %vm1060, %v1056, inf
          %1062 = vmin.xlane.f32.xlu0 %v1061
          %v1063 = vpop.xlane.xlu0 %1062
          %v1064 = vcvt.f32.s32 %v1063
          %v1065 = vcvt.f32.s32 %v1059
          %v1066 = vshll.u32 %v1065, 16
          %v1067 = vadd.s32 %v1066, %v1064
          %v1068 = vsel %vm970, %v1038, 2147483647
          %v1069 = vand.u32 %v1068, 65535
          %v1070 = vshra.s32 %v1068, 16
          %v1071 = vcvt.s32.f32 %v1069
          %v1072 = vcvt.s32.f32 %v1070
          %1073 = vmin.xlane.f32.xlu0 %v1072
          %v1074 = vpop.xlane.xlu0 %1073
          %vm1075 = vcmp.eq.f32.partialorder %v1072, %v1074
          %v1076 = vsel %vm1075, %v1071, inf
          %1077 = vmin.xlane.f32.xlu0 %v1076
          %v1078 = vpop.xlane.xlu0 %1077
          %v1079 = vcvt.f32.s32 %v1078
          %v1080 = vcvt.f32.s32 %v1074
          %v1081 = vshll.u32 %v1080, 16
          %v1082 = vadd.s32 %v1081, %v1079
          %v1083 = vsel %vm970, %v1039, 2147483647
          %v1084 = vand.u32 %v1083, 65535
          %v1085 = vshra.s32 %v1083, 16
          %v1086 = vcvt.s32.f32 %v1084
          %v1087 = vcvt.s32.f32 %v1085
          %1088 = vmin.xlane.f32.xlu0 %v1087
          %v1089 = vpop.xlane.xlu0 %1088
          %vm1090 = vcmp.eq.f32.partialorder %v1087, %v1089
          %v1091 = vsel %vm1090, %v1086, inf
          %1092 = vmin.xlane.f32.xlu0 %v1091
          %v1093 = vpop.xlane.xlu0 %1092
          %v1094 = vcvt.f32.s32 %v1093
          %v1095 = vcvt.f32.s32 %v1089
          %v1096 = vshll.u32 %v1095, 16
          %v1097 = vadd.s32 %v1096, %v1094
          %v1098 = vsel %vm970, %v1040, 2147483647
          %v1099 = vand.u32 %v1098, 65535
          %v1100 = vshra.s32 %v1098, 16
          %v1101 = vcvt.s32.f32 %v1099
          %v1102 = vcvt.s32.f32 %v1100
          %1103 = vmin.xlane.f32.xlu0 %v1102
          %v1104 = vpop.xlane.xlu0 %1103
          %vm1105 = vcmp.eq.f32.partialorder %v1102, %v1104
          %v1106 = vsel %vm1105, %v1101, inf
          %1107 = vmin.xlane.f32.xlu0 %v1106
          %v1108 = vpop.xlane.xlu0 %1107
          %v1109 = vcvt.f32.s32 %v1108
          %v1110 = vcvt.f32.s32 %v1104
          %v1111 = vshll.u32 %v1110, 16
          %v1112 = vadd.s32 %v1111, %v1109
          %v1113 = vsel %vm970, %v1041, 2147483647
          %v1114 = vand.u32 %v1113, 65535
          %v1115 = vshra.s32 %v1113, 16
          %v1116 = vcvt.s32.f32 %v1114
          %v1117 = vcvt.s32.f32 %v1115
          %1118 = vmin.xlane.f32.xlu0 %v1117
          %v1119 = vpop.xlane.xlu0 %1118
          %vm1120 = vcmp.eq.f32.partialorder %v1117, %v1119
          %v1121 = vsel %vm1120, %v1116, inf
          %1122 = vmin.xlane.f32.xlu0 %v1121
          %v1123 = vpop.xlane.xlu0 %1122
          %v1124 = vcvt.f32.s32 %v1123
          %v1125 = vcvt.f32.s32 %v1119
          %v1126 = vshll.u32 %v1125, 16
          %v1127 = vadd.s32 %v1126, %v1124
          %v1128 = vsel %vm970, %v1042, 2147483647
          %v1129 = vand.u32 %v1128, 65535
          %v1130 = vshra.s32 %v1128, 16
          %v1131 = vcvt.s32.f32 %v1129
          %v1132 = vcvt.s32.f32 %v1130
          %1133 = vmin.xlane.f32.xlu0 %v1132
          %v1134 = vpop.xlane.xlu0 %1133
          %vm1135 = vcmp.eq.f32.partialorder %v1132, %v1134
          %v1136 = vsel %vm1135, %v1131, inf
          %1137 = vmin.xlane.f32.xlu0 %v1136
          %v1138 = vpop.xlane.xlu0 %1137
          %v1139 = vcvt.f32.s32 %v1138
          %v1140 = vcvt.f32.s32 %v1134
          %v1141 = vshll.u32 %v1140, 16
          %v1142 = vadd.s32 %v1141, %v1139
          %v1143 = vsel %vm970, %v1043, 2147483647
          %v1144 = vand.u32 %v1143, 65535
          %v1145 = vshra.s32 %v1143, 16
          %v1146 = vcvt.s32.f32 %v1144
          %v1147 = vcvt.s32.f32 %v1145
          %1148 = vmin.xlane.f32.xlu0 %v1147
          %v1149 = vpop.xlane.xlu0 %1148
          %vm1150 = vcmp.eq.f32.partialorder %v1147, %v1149
          %v1151 = vsel %vm1150, %v1146, inf
          %1152 = vmin.xlane.f32.xlu0 %v1151
          %v1153 = vpop.xlane.xlu0 %1152
          %v1154 = vcvt.f32.s32 %v1153
          %v1155 = vcvt.f32.s32 %v1149
          %v1156 = vshll.u32 %v1155, 16
          %v1157 = vadd.s32 %v1156, %v1154
          %v1158 = vsel %vm970, %v1044, 2147483647
          %v1159 = vand.u32 %v1158, 65535
          %v1160 = vshra.s32 %v1158, 16
          %v1161 = vcvt.s32.f32 %v1159
          %v1162 = vcvt.s32.f32 %v1160
          %1163 = vmin.xlane.f32.xlu0 %v1162
          %v1164 = vpop.xlane.xlu0 %1163
          %vm1165 = vcmp.eq.f32.partialorder %v1162, %v1164
          %v1166 = vsel %vm1165, %v1161, inf
          %1167 = vmin.xlane.f32.xlu0 %v1166
          %v1168 = vpop.xlane.xlu0 %1167
          %v1169 = vcvt.f32.s32 %v1168
          %v1170 = vcvt.f32.s32 %v1164
          %v1171 = vshll.u32 %v1170, 16
          %v1172 = vadd.s32 %v1171, %v1169
          %v1173 = vsel %vm970, %v1045, 2147483647
          %v1174 = vand.u32 %v1173, 65535
          %v1175 = vshra.s32 %v1173, 16
          %v1176 = vcvt.s32.f32 %v1174
          %v1177 = vcvt.s32.f32 %v1175
          %1178 = vmin.xlane.f32.xlu0 %v1177
          %v1179 = vpop.xlane.xlu0 %1178
          %vm1180 = vcmp.eq.f32.partialorder %v1177, %v1179
          %v1181 = vsel %vm1180, %v1176, inf
          %1182 = vmin.xlane.f32.xlu0 %v1181
          %v1183 = vpop.xlane.xlu0 %1182
          %v1184 = vcvt.f32.s32 %v1183
          %v1185 = vcvt.f32.s32 %v1179
          %v1186 = vshll.u32 %v1185, 16
          %v1187 = vadd.s32 %v1186, %v1184
          %v1188 = vsel %vm970, %v1046, 2147483647
          %v1189 = vand.u32 %v1188, 65535
          %v1190 = vshra.s32 %v1188, 16
          %v1191 = vcvt.s32.f32 %v1189
          %v1192 = vcvt.s32.f32 %v1190
          %1193 = vmin.xlane.f32.xlu0 %v1192
          %v1194 = vpop.xlane.xlu0 %1193
          %vm1195 = vcmp.eq.f32.partialorder %v1192, %v1194
          %v1196 = vsel %vm1195, %v1191, inf
          %1197 = vmin.xlane.f32.xlu0 %v1196
          %v1198 = vpop.xlane.xlu0 %1197
          %v1199 = vcvt.f32.s32 %v1198
          %v1200 = vcvt.f32.s32 %v1194
          %v1201 = vshll.u32 %v1200, 16
          %v1202 = vadd.s32 %v1201, %v1199
          %v1203 = vsel %vm970, %v1047, 2147483647
          %v1204 = vand.u32 %v1203, 65535
          %v1205 = vshra.s32 %v1203, 16
          %v1206 = vcvt.s32.f32 %v1204
          %v1207 = vcvt.s32.f32 %v1205
          %1208 = vmin.xlane.f32.xlu0 %v1207
          %v1209 = vpop.xlane.xlu0 %1208
          %vm1210 = vcmp.eq.f32.partialorder %v1207, %v1209
          %v1211 = vsel %vm1210, %v1206, inf
          %1212 = vmin.xlane.f32.xlu0 %v1211
          %v1213 = vpop.xlane.xlu0 %1212
          %v1214 = vcvt.f32.s32 %v1213
          %v1215 = vcvt.f32.s32 %v1209
          %v1216 = vshll.u32 %v1215, 16
          %v1217 = vadd.s32 %v1216, %v1214
          %v1218 = vsel %vm970, %v1048, 2147483647
          %v1219 = vand.u32 %v1218, 65535
          %v1220 = vshra.s32 %v1218, 16
          %v1221 = vcvt.s32.f32 %v1219
          %v1222 = vcvt.s32.f32 %v1220
          %1223 = vmin.xlane.f32.xlu0 %v1222
          %v1224 = vpop.xlane.xlu0 %1223
          %vm1225 = vcmp.eq.f32.partialorder %v1222, %v1224
          %v1226 = vsel %vm1225, %v1221, inf
          %1227 = vmin.xlane.f32.xlu0 %v1226
          %v1228 = vpop.xlane.xlu0 %1227
          %v1229 = vcvt.f32.s32 %v1228
          %v1230 = vcvt.f32.s32 %v1224
          %v1231 = vshll.u32 %v1230, 16
          %v1232 = vadd.s32 %v1231, %v1229
          %v1233 = vsel %vm970, %v1049, 2147483647
          %v1234 = vand.u32 %v1233, 65535
          %v1235 = vshra.s32 %v1233, 16
          %v1236 = vcvt.s32.f32 %v1234
          %v1237 = vcvt.s32.f32 %v1235
          %1238 = vmin.xlane.f32.xlu0 %v1237
          %v1239 = vpop.xlane.xlu0 %1238
          %vm1240 = vcmp.eq.f32.partialorder %v1237, %v1239
          %v1241 = vsel %vm1240, %v1236, inf
          %1242 = vmin.xlane.f32.xlu0 %v1241
          %v1243 = vpop.xlane.xlu0 %1242
          %v1244 = vcvt.f32.s32 %v1243
          %v1245 = vcvt.f32.s32 %v1239
          %v1246 = vshll.u32 %v1245, 16
          %v1247 = vadd.s32 %v1246, %v1244
          %v1248 = vsel %vm970, %v1050, 2147483647
          %v1249 = vand.u32 %v1248, 65535
          %v1250 = vshra.s32 %v1248, 16
          %v1251 = vcvt.s32.f32 %v1249
          %v1252 = vcvt.s32.f32 %v1250
          %1253 = vmin.xlane.f32.xlu0 %v1252
          %v1254 = vpop.xlane.xlu0 %1253
          %vm1255 = vcmp.eq.f32.partialorder %v1252, %v1254
          %v1256 = vsel %vm1255, %v1251, inf
          %1257 = vmin.xlane.f32.xlu0 %v1256
          %v1258 = vpop.xlane.xlu0 %1257
          %v1259 = vcvt.f32.s32 %v1258
          %v1260 = vcvt.f32.s32 %v1254
          %v1261 = vshll.u32 %v1260, 16
          %v1262 = vadd.s32 %v1261, %v1259
          %v1263 = vsel %vm970, %v1051, 2147483647
          %v1264 = vand.u32 %v1263, 65535
          %v1265 = vshra.s32 %v1263, 16
          %v1266 = vcvt.s32.f32 %v1264
          %v1267 = vcvt.s32.f32 %v1265
          %1268 = vmin.xlane.f32.xlu0 %v1267
          %v1269 = vpop.xlane.xlu0 %1268
          %vm1270 = vcmp.eq.f32.partialorder %v1267, %v1269
          %v1271 = vsel %vm1270, %v1266, inf
          %1272 = vmin.xlane.f32.xlu0 %v1271
          %v1273 = vpop.xlane.xlu0 %1272
          %v1274 = vcvt.f32.s32 %v1273
          %v1275 = vcvt.f32.s32 %v1269
          %v1276 = vshll.u32 %v1275, 16
          %v1277 = vadd.s32 %v1276, %v1274
          %v1278 = vsel %vm970, %v1052, 2147483647
          %v1279 = vand.u32 %v1278, 65535
          %v1280 = vshra.s32 %v1278, 16
          %v1281 = vcvt.s32.f32 %v1279
          %v1282 = vcvt.s32.f32 %v1280
          %1283 = vmin.xlane.f32.xlu0 %v1282
          %v1284 = vpop.xlane.xlu0 %1283
          %vm1285 = vcmp.eq.f32.partialorder %v1282, %v1284
          %v1286 = vsel %vm1285, %v1281, inf
          %1287 = vmin.xlane.f32.xlu0 %v1286
          %v1288 = vpop.xlane.xlu0 %1287
          %v1289 = vcvt.f32.s32 %v1288
          %v1290 = vcvt.f32.s32 %v1284
          %v1291 = vshll.u32 %v1290, 16
          %v1292 = vadd.s32 %v1291, %v1289
          %vm1293 = vcmp.eq.s32.totalorder %v1067, 1
          %vm1294 = vcmp.eq.s32.totalorder %v1082, 1
          %vm1295 = vcmp.eq.s32.totalorder %v1097, 1
          %vm1296 = vcmp.eq.s32.totalorder %v1112, 1
          %vm1297 = vcmp.eq.s32.totalorder %v1127, 1
          %vm1298 = vcmp.eq.s32.totalorder %v1142, 1
          %vm1299 = vcmp.eq.s32.totalorder %v1157, 1
          %vm1300 = vcmp.eq.s32.totalorder %v1172, 1
          %vm1301 = vcmp.eq.s32.totalorder %v1187, 1
          %vm1302 = vcmp.eq.s32.totalorder %v1202, 1
          %vm1303 = vcmp.eq.s32.totalorder %v1217, 1
          %vm1304 = vcmp.eq.s32.totalorder %v1232, 1
          %vm1305 = vcmp.eq.s32.totalorder %v1247, 1
          %vm1306 = vcmp.eq.s32.totalorder %v1262, 1
          %vm1307 = vcmp.eq.s32.totalorder %v1277, 1
          %vm1308 = vcmp.eq.s32.totalorder %v1292, 1
          %v1309 = vsel %vm1293, 1, 0
          %v1310 = vsel %vm1294, 1, 0
          %v1311 = vsel %vm1295, 1, 0
          %v1312 = vsel %vm1296, 1, 0
          %v1313 = vsel %vm1297, 1, 0
          %v1314 = vsel %vm1298, 1, 0
          %v1315 = vsel %vm1299, 1, 0
          %v1316 = vsel %vm1300, 1, 0
          %v1317 = vsel %vm1301, 1, 0
          %v1318 = vsel %vm1302, 1, 0
          %v1319 = vsel %vm1303, 1, 0
          %v1320 = vsel %vm1304, 1, 0
          %v1321 = vsel %vm1305, 1, 0
          %v1322 = vsel %vm1306, 1, 0
          %v1323 = vsel %vm1307, 1, 0
          %v1324 = vsel %vm1308, 1, 0
          %vm1325 = vcmp.eq.s32.totalorder %v1309, 1
          %vm1326 = vcmp.eq.s32.totalorder %v1310, 1
          %vm1327 = vcmp.eq.s32.totalorder %v1311, 1
          %vm1328 = vcmp.eq.s32.totalorder %v1312, 1
          %vm1329 = vcmp.eq.s32.totalorder %v1313, 1
          %vm1330 = vcmp.eq.s32.totalorder %v1314, 1
          %vm1331 = vcmp.eq.s32.totalorder %v1315, 1
          %vm1332 = vcmp.eq.s32.totalorder %v1316, 1
          %vm1333 = vcmp.eq.s32.totalorder %v1317, 1
          %vm1334 = vcmp.eq.s32.totalorder %v1318, 1
          %vm1335 = vcmp.eq.s32.totalorder %v1319, 1
          %vm1336 = vcmp.eq.s32.totalorder %v1320, 1
          %vm1337 = vcmp.eq.s32.totalorder %v1321, 1
          %vm1338 = vcmp.eq.s32.totalorder %v1322, 1
          %vm1339 = vcmp.eq.s32.totalorder %v1323, 1
          %vm1340 = vcmp.eq.s32.totalorder %v1324, 1
          %1357 = vrot.lane.b32.xlu0 %v892, 8
          %v1358 = vpop.permute.xlu0 %1357
          %1359 = vrot.lane.b32.xlu0 %v897, 8
          %v1360 = vpop.permute.xlu0 %1359
          %1361 = vrot.lane.b32.xlu0 %v902, 8
          %v1362 = vpop.permute.xlu0 %1361
          %1363 = vrot.lane.b32.xlu0 %v907, 8
          %v1364 = vpop.permute.xlu0 %1363
          %1365 = vrot.lane.b32.xlu0 %v912, 8
          %v1366 = vpop.permute.xlu0 %1365
          %1367 = vrot.lane.b32.xlu0 %v917, 8
          %v1368 = vpop.permute.xlu0 %1367
          %1369 = vrot.lane.b32.xlu0 %v922, 8
          %v1370 = vpop.permute.xlu0 %1369
          %1371 = vrot.lane.b32.xlu0 %v927, 8
          %v1372 = vpop.permute.xlu0 %1371
          %1373 = vrot.lane.b32.xlu0 %v932, 8
          %v1374 = vpop.permute.xlu0 %1373
          %1375 = vrot.lane.b32.xlu0 %v937, 8
          %v1376 = vpop.permute.xlu0 %1375
          %1377 = vrot.lane.b32.xlu0 %v942, 8
          %v1378 = vpop.permute.xlu0 %1377
          %1379 = vrot.lane.b32.xlu0 %v947, 8
          %v1380 = vpop.permute.xlu0 %1379
          %1381 = vrot.lane.b32.xlu0 %v952, 8
          %v1382 = vpop.permute.xlu0 %1381
          %1383 = vrot.lane.b32.xlu0 %v957, 8
          %v1384 = vpop.permute.xlu0 %1383
          %1385 = vrot.lane.b32.xlu0 %v962, 8
          %v1386 = vpop.permute.xlu0 %1385
          %1387 = vrot.lane.b32.xlu0 %v967, 8
          %v1388 = vpop.permute.xlu0 %1387
          %v1405 = vsel %vm1325, %v892, %v1358
          %v1406 = vsel %vm1326, %v897, %v1360
          %v1407 = vsel %vm1327, %v902, %v1362
          %v1408 = vsel %vm1328, %v907, %v1364
          %v1409 = vsel %vm1329, %v912, %v1366
          %v1410 = vsel %vm1330, %v917, %v1368
          %v1411 = vsel %vm1331, %v922, %v1370
          %v1412 = vsel %vm1332, %v927, %v1372
          %v1413 = vsel %vm1333, %v932, %v1374
          %v1414 = vsel %vm1334, %v937, %v1376
          %v1415 = vsel %vm1335, %v942, %v1378
          %v1416 = vsel %vm1336, %v947, %v1380
          %v1417 = vsel %vm1337, %v952, %v1382
          %v1418 = vsel %vm1338, %v957, %v1384
          %v1419 = vsel %vm1339, %v962, %v1386
          %v1420 = vsel %vm1340, %v967, %v1388
          %vm1421 = vcmp.eq.s32.totalorder %v1067, 2
          %vm1422 = vcmp.eq.s32.totalorder %v1082, 2
          %vm1423 = vcmp.eq.s32.totalorder %v1097, 2
          %vm1424 = vcmp.eq.s32.totalorder %v1112, 2
          %vm1425 = vcmp.eq.s32.totalorder %v1127, 2
          %vm1426 = vcmp.eq.s32.totalorder %v1142, 2
          %vm1427 = vcmp.eq.s32.totalorder %v1157, 2
          %vm1428 = vcmp.eq.s32.totalorder %v1172, 2
          %vm1429 = vcmp.eq.s32.totalorder %v1187, 2
          %vm1430 = vcmp.eq.s32.totalorder %v1202, 2
          %vm1431 = vcmp.eq.s32.totalorder %v1217, 2
          %vm1432 = vcmp.eq.s32.totalorder %v1232, 2
          %vm1433 = vcmp.eq.s32.totalorder %v1247, 2
          %vm1434 = vcmp.eq.s32.totalorder %v1262, 2
          %vm1435 = vcmp.eq.s32.totalorder %v1277, 2
          %vm1436 = vcmp.eq.s32.totalorder %v1292, 2
          %v1437 = vsel %vm1421, 1, 0
          %v1438 = vsel %vm1422, 1, 0
          %v1439 = vsel %vm1423, 1, 0
          %v1440 = vsel %vm1424, 1, 0
          %v1441 = vsel %vm1425, 1, 0
          %v1442 = vsel %vm1426, 1, 0
          %v1443 = vsel %vm1427, 1, 0
          %v1444 = vsel %vm1428, 1, 0
          %v1445 = vsel %vm1429, 1, 0
          %v1446 = vsel %vm1430, 1, 0
          %v1447 = vsel %vm1431, 1, 0
          %v1448 = vsel %vm1432, 1, 0
          %v1449 = vsel %vm1433, 1, 0
          %v1450 = vsel %vm1434, 1, 0
          %v1451 = vsel %vm1435, 1, 0
          %v1452 = vsel %vm1436, 1, 0
          %vm1453 = vcmp.eq.s32.totalorder %v1437, 1
          %vm1454 = vcmp.eq.s32.totalorder %v1438, 1
          %vm1455 = vcmp.eq.s32.totalorder %v1439, 1
          %vm1456 = vcmp.eq.s32.totalorder %v1440, 1
          %vm1457 = vcmp.eq.s32.totalorder %v1441, 1
          %vm1458 = vcmp.eq.s32.totalorder %v1442, 1
          %vm1459 = vcmp.eq.s32.totalorder %v1443, 1
          %vm1460 = vcmp.eq.s32.totalorder %v1444, 1
          %vm1461 = vcmp.eq.s32.totalorder %v1445, 1
          %vm1462 = vcmp.eq.s32.totalorder %v1446, 1
          %vm1463 = vcmp.eq.s32.totalorder %v1447, 1
          %vm1464 = vcmp.eq.s32.totalorder %v1448, 1
          %vm1465 = vcmp.eq.s32.totalorder %v1449, 1
          %vm1466 = vcmp.eq.s32.totalorder %v1450, 1
          %vm1467 = vcmp.eq.s32.totalorder %v1451, 1
          %vm1468 = vcmp.eq.s32.totalorder %v1452, 1
          %1485 = vrot.lane.b32.xlu0 %v1405, 8
          %v1486 = vpop.permute.xlu0 %1485
          %1487 = vrot.lane.b32.xlu0 %v1406, 8
          %v1488 = vpop.permute.xlu0 %1487
          %1489 = vrot.lane.b32.xlu0 %v1407, 8
          %v1490 = vpop.permute.xlu0 %1489
          %1491 = vrot.lane.b32.xlu0 %v1408, 8
          %v1492 = vpop.permute.xlu0 %1491
          %1493 = vrot.lane.b32.xlu0 %v1409, 8
          %v1494 = vpop.permute.xlu0 %1493
          %1495 = vrot.lane.b32.xlu0 %v1410, 8
          %v1496 = vpop.permute.xlu0 %1495
          %1497 = vrot.lane.b32.xlu0 %v1411, 8
          %v1498 = vpop.permute.xlu0 %1497
          %1499 = vrot.lane.b32.xlu0 %v1412, 8
          %v1500 = vpop.permute.xlu0 %1499
          %1501 = vrot.lane.b32.xlu0 %v1413, 8
          %v1502 = vpop.permute.xlu0 %1501
          %1503 = vrot.lane.b32.xlu0 %v1414, 8
          %v1504 = vpop.permute.xlu0 %1503
          %1505 = vrot.lane.b32.xlu0 %v1415, 8
          %v1506 = vpop.permute.xlu0 %1505
          %1507 = vrot.lane.b32.xlu0 %v1416, 8
          %v1508 = vpop.permute.xlu0 %1507
          %1509 = vrot.lane.b32.xlu0 %v1417, 8
          %v1510 = vpop.permute.xlu0 %1509
          %1511 = vrot.lane.b32.xlu0 %v1418, 8
          %v1512 = vpop.permute.xlu0 %1511
          %1513 = vrot.lane.b32.xlu0 %v1419, 8
          %v1514 = vpop.permute.xlu0 %1513
          %1515 = vrot.lane.b32.xlu0 %v1420, 8
          %v1516 = vpop.permute.xlu0 %1515
          %v1533 = vsel %vm1453, %v892, %v1486
          %v1534 = vsel %vm1454, %v897, %v1488
          %v1535 = vsel %vm1455, %v902, %v1490
          %v1536 = vsel %vm1456, %v907, %v1492
          %v1537 = vsel %vm1457, %v912, %v1494
          %v1538 = vsel %vm1458, %v917, %v1496
          %v1539 = vsel %vm1459, %v922, %v1498
          %v1540 = vsel %vm1460, %v927, %v1500
          %v1541 = vsel %vm1461, %v932, %v1502
          %v1542 = vsel %vm1462, %v937, %v1504
          %v1543 = vsel %vm1463, %v942, %v1506
          %v1544 = vsel %vm1464, %v947, %v1508
          %v1545 = vsel %vm1465, %v952, %v1510
          %v1546 = vsel %vm1466, %v957, %v1512
          %v1547 = vsel %vm1467, %v962, %v1514
          %v1548 = vsel %vm1468, %v967, %v1516
          %vm1549 = vcmp.eq.s32.totalorder %v1067, 3
          %vm1550 = vcmp.eq.s32.totalorder %v1082, 3
          %vm1551 = vcmp.eq.s32.totalorder %v1097, 3
          %vm1552 = vcmp.eq.s32.totalorder %v1112, 3
          %vm1553 = vcmp.eq.s32.totalorder %v1127, 3
          %vm1554 = vcmp.eq.s32.totalorder %v1142, 3
          %vm1555 = vcmp.eq.s32.totalorder %v1157, 3
          %vm1556 = vcmp.eq.s32.totalorder %v1172, 3
          %vm1557 = vcmp.eq.s32.totalorder %v1187, 3
          %vm1558 = vcmp.eq.s32.totalorder %v1202, 3
          %vm1559 = vcmp.eq.s32.totalorder %v1217, 3
          %vm1560 = vcmp.eq.s32.totalorder %v1232, 3
          %vm1561 = vcmp.eq.s32.totalorder %v1247, 3
          %vm1562 = vcmp.eq.s32.totalorder %v1262, 3
          %vm1563 = vcmp.eq.s32.totalorder %v1277, 3
          %vm1564 = vcmp.eq.s32.totalorder %v1292, 3
          %v1565 = vsel %vm1549, 1, 0
          %v1566 = vsel %vm1550, 1, 0
          %v1567 = vsel %vm1551, 1, 0
          %v1568 = vsel %vm1552, 1, 0
          %v1569 = vsel %vm1553, 1, 0
          %v1570 = vsel %vm1554, 1, 0
          %v1571 = vsel %vm1555, 1, 0
          %v1572 = vsel %vm1556, 1, 0
          %v1573 = vsel %vm1557, 1, 0
          %v1574 = vsel %vm1558, 1, 0
          %v1575 = vsel %vm1559, 1, 0
          %v1576 = vsel %vm1560, 1, 0
          %v1577 = vsel %vm1561, 1, 0
          %v1578 = vsel %vm1562, 1, 0
          %v1579 = vsel %vm1563, 1, 0
          %v1580 = vsel %vm1564, 1, 0
          %vm1581 = vcmp.eq.s32.totalorder %v1565, 1
          %vm1582 = vcmp.eq.s32.totalorder %v1566, 1
          %vm1583 = vcmp.eq.s32.totalorder %v1567, 1
          %vm1584 = vcmp.eq.s32.totalorder %v1568, 1
          %vm1585 = vcmp.eq.s32.totalorder %v1569, 1
          %vm1586 = vcmp.eq.s32.totalorder %v1570, 1
          %vm1587 = vcmp.eq.s32.totalorder %v1571, 1
          %vm1588 = vcmp.eq.s32.totalorder %v1572, 1
          %vm1589 = vcmp.eq.s32.totalorder %v1573, 1
          %vm1590 = vcmp.eq.s32.totalorder %v1574, 1
          %vm1591 = vcmp.eq.s32.totalorder %v1575, 1
          %vm1592 = vcmp.eq.s32.totalorder %v1576, 1
          %vm1593 = vcmp.eq.s32.totalorder %v1577, 1
          %vm1594 = vcmp.eq.s32.totalorder %v1578, 1
          %vm1595 = vcmp.eq.s32.totalorder %v1579, 1
          %vm1596 = vcmp.eq.s32.totalorder %v1580, 1
          %1613 = vrot.lane.b32.xlu0 %v1533, 8
          %v1614 = vpop.permute.xlu0 %1613
          %1615 = vrot.lane.b32.xlu0 %v1534, 8
          %v1616 = vpop.permute.xlu0 %1615
          %1617 = vrot.lane.b32.xlu0 %v1535, 8
          %v1618 = vpop.permute.xlu0 %1617
          %1619 = vrot.lane.b32.xlu0 %v1536, 8
          %v1620 = vpop.permute.xlu0 %1619
          %1621 = vrot.lane.b32.xlu0 %v1537, 8
          %v1622 = vpop.permute.xlu0 %1621
          %1623 = vrot.lane.b32.xlu0 %v1538, 8
          %v1624 = vpop.permute.xlu0 %1623
          %1625 = vrot.lane.b32.xlu0 %v1539, 8
          %v1626 = vpop.permute.xlu0 %1625
          %1627 = vrot.lane.b32.xlu0 %v1540, 8
          %v1628 = vpop.permute.xlu0 %1627
          %1629 = vrot.lane.b32.xlu0 %v1541, 8
          %v1630 = vpop.permute.xlu0 %1629
          %1631 = vrot.lane.b32.xlu0 %v1542, 8
          %v1632 = vpop.permute.xlu0 %1631
          %1633 = vrot.lane.b32.xlu0 %v1543, 8
          %v1634 = vpop.permute.xlu0 %1633
          %1635 = vrot.lane.b32.xlu0 %v1544, 8
          %v1636 = vpop.permute.xlu0 %1635
          %1637 = vrot.lane.b32.xlu0 %v1545, 8
          %v1638 = vpop.permute.xlu0 %1637
          %1639 = vrot.lane.b32.xlu0 %v1546, 8
          %v1640 = vpop.permute.xlu0 %1639
          %1641 = vrot.lane.b32.xlu0 %v1547, 8
          %v1642 = vpop.permute.xlu0 %1641
          %1643 = vrot.lane.b32.xlu0 %v1548, 8
          %v1644 = vpop.permute.xlu0 %1643
          %v1661 = vsel %vm1581, %v892, %v1614
          %v1662 = vsel %vm1582, %v897, %v1616
          %v1663 = vsel %vm1583, %v902, %v1618
          %v1664 = vsel %vm1584, %v907, %v1620
          %v1665 = vsel %vm1585, %v912, %v1622
          %v1666 = vsel %vm1586, %v917, %v1624
          %v1667 = vsel %vm1587, %v922, %v1626
          %v1668 = vsel %vm1588, %v927, %v1628
          %v1669 = vsel %vm1589, %v932, %v1630
          %v1670 = vsel %vm1590, %v937, %v1632
          %v1671 = vsel %vm1591, %v942, %v1634
          %v1672 = vsel %vm1592, %v947, %v1636
          %v1673 = vsel %vm1593, %v952, %v1638
          %v1674 = vsel %vm1594, %v957, %v1640
          %v1675 = vsel %vm1595, %v962, %v1642
          %v1676 = vsel %vm1596, %v967, %v1644
          %1693 = vrot.lane.b32.xlu0 %v1661, 100
          %v1694 = vpop.permute.xlu0 %1693
          %1695 = vrot.lane.b32.xlu0 %v1662, 100
          %v1696 = vpop.permute.xlu0 %1695
          %1697 = vrot.lane.b32.xlu0 %v1663, 100
          %v1698 = vpop.permute.xlu0 %1697
          %1699 = vrot.lane.b32.xlu0 %v1664, 100
          %v1700 = vpop.permute.xlu0 %1699
          %1701 = vrot.lane.b32.xlu0 %v1665, 100
          %v1702 = vpop.permute.xlu0 %1701
          %1703 = vrot.lane.b32.xlu0 %v1666, 100
          %v1704 = vpop.permute.xlu0 %1703
          %1705 = vrot.lane.b32.xlu0 %v1667, 100
          %v1706 = vpop.permute.xlu0 %1705
          %1707 = vrot.lane.b32.xlu0 %v1668, 100
          %v1708 = vpop.permute.xlu0 %1707
          %1709 = vrot.lane.b32.xlu0 %v1669, 100
          %v1710 = vpop.permute.xlu0 %1709
          %1711 = vrot.lane.b32.xlu0 %v1670, 100
          %v1712 = vpop.permute.xlu0 %1711
          %1713 = vrot.lane.b32.xlu0 %v1671, 100
          %v1714 = vpop.permute.xlu0 %1713
          %1715 = vrot.lane.b32.xlu0 %v1672, 100
          %v1716 = vpop.permute.xlu0 %1715
          %1717 = vrot.lane.b32.xlu0 %v1673, 100
          %v1718 = vpop.permute.xlu0 %1717
          %1719 = vrot.lane.b32.xlu0 %v1674, 100
          %v1720 = vpop.permute.xlu0 %1719
          %1721 = vrot.lane.b32.xlu0 %v1675, 100
          %v1722 = vpop.permute.xlu0 %1721
          %1723 = vrot.lane.b32.xlu0 %v1676, 100
          %v1724 = vpop.permute.xlu0 %1723
          %vm1741 = vcmask 64512
          %v1742 = vsel %vm1741, %v1694, 0.0
          %v1743 = vsel %vm1741, %v1696, 0.0
          %v1744 = vsel %vm1741, %v1698, 0.0
          %v1745 = vsel %vm1741, %v1700, 0.0
          %v1746 = vsel %vm1741, %v1702, 0.0
          %v1747 = vsel %vm1741, %v1704, 0.0
          %v1748 = vsel %vm1741, %v1706, 0.0
          %v1749 = vsel %vm1741, %v1708, 0.0
          %v1750 = vsel %vm1741, %v1710, 0.0
          %v1751 = vsel %vm1741, %v1712, 0.0
          %v1752 = vsel %vm1741, %v1714, 0.0
          %v1753 = vsel %vm1741, %v1716, 0.0
          %v1754 = vsel %vm1741, %v1718, 0.0
          %v1755 = vsel %vm1741, %v1720, 0.0
          %v1756 = vsel %vm1741, %v1722, 0.0
          %v1757 = vsel %vm1741, %v1724, 0.0
          %1758 = vst [vmem:[%s331] sm:$0xff] %v1742
          %1759 = vst [vmem:[%s331 + $0x8] sm:$0xff] %v1743
          %1760 = vst [vmem:[%s331 + $0x10] sm:$0xff] %v1744
          %1761 = vst [vmem:[%s331 + $0x18] sm:$0xff] %v1745
          %1762 = vst [vmem:[%s331 + $0x20] sm:$0xff] %v1746
          %1763 = vst [vmem:[%s331 + $0x28] sm:$0xff] %v1747
          %1764 = vst [vmem:[%s331 + $0x30] sm:$0xff] %v1748
          %1765 = vst [vmem:[%s331 + $0x38] sm:$0xff] %v1749
          %1766 = vst [vmem:[%s331 + $0x40] sm:$0xff] %v1750
          %1767 = vst [vmem:[%s331 + $0x48] sm:$0xff] %v1751
          %1768 = vst [vmem:[%s331 + $0x50] sm:$0xff] %v1752
          %1769 = vst [vmem:[%s331 + $0x58] sm:$0xff] %v1753
          %1770 = vst [vmem:[%s331 + $0x60] sm:$0xff] %v1754
          %1771 = vst [vmem:[%s331 + $0x68] sm:$0xff] %v1755
          %1772 = vst [vmem:[%s331 + $0x70] sm:$0xff] %v1756
          %1773 = vst [vmem:[%s331 + $0x78] sm:$0xff] %v1757
        $region85: #{tpu_custom_call.1} parent=72 // pred_fallthru
          _
        %s1774 = sand.u32 %s134, 1
        %s1775 = scalar_lea.sflag [#allocation5], %s1774
        %s1776 = sand.u32 %s134, 1
        %s1777 = smul.addr %s1776, 128
        %s1778 = scalar_lea.vmem [#allocation4], %s1777
        // Predicated region
        $region86: #{tpu_custom_call.1} parent=72 // pred_check
          %p1779 = pneg %p144
        $region87: #{tpu_custom_call.1} parent=72 // pred_check_branch
          %1781 = sbr.rel (%p1779) target = $region89
        $region88: #{tpu_custom_call.1} parent=72 // pred_region
          %s1782 = smul.u32 16, %s22
          %s1784 = ssub.s32 2048, 2048
          %1785 = vsyncadd %s1775, %s1784
          %s1786 = smul.addr %s1782, 128
          %s1787 = scalar_lea.hbm %s4, %s1786
          %s1788 = sshll.u32 %s1778, 4
          %s1789 = int_to_ptr.vmem [resolvable:$true] %s1788
          %1794 = dma.vmem_to_hbm [thread:$0]  %s1789, 2048, %s1787, %s1775, 128, 128, 8
        $region89: #{tpu_custom_call.1} parent=72 // pred_fallthru
          _
      $region73: #{tpu_custom_call.1} parent=5 // pred_fallthru
        _
      %p1795 = scmp.le.s32.totalorder 2, %s13
      // Predicated region
      $region90: #{tpu_custom_call.1} parent=5 // pred_check
        %p1796 = pneg %p1795
      $region91: #{tpu_custom_call.1} parent=5 // pred_check_branch
        %1798 = sbr.rel (%p1796) target = $region93
      $region92: #{tpu_custom_call.1} parent=5 // pred_region
        %s1799 = ssub.s32 %s13, 2
        // Predicated region
        $region94: #{tpu_custom_call.1} parent=92 // pred_check
          %p1800 = pneg %p150
        $region95: #{tpu_custom_call.1} parent=92 // pred_check_branch
          %1802 = sbr.rel (%p1800) target = $region97
        $region96: #{tpu_custom_call.1} parent=92 // pred_region
          %s1803 = sand.u32 %s135, 1
          %s1804 = scalar_lea.sflag [#allocation5], %s1803
          %s1805 = sand.u32 %s135, 1
          %s1806 = smul.addr %s1805, 128
          %s1807 = scalar_lea.vmem [#allocation4], %s1806
          %1808 = dma.done %s1804, 2048
        $region97: #{tpu_custom_call.1} parent=92 // pred_fallthru
          _
      $region93: #{tpu_custom_call.1} parent=5 // pred_fallthru
        _
    $region6: #{tpu_custom_call.1} parent=1 // loop_footer
      %s17 = sadd.s32 1, %s13
    $region7: #{tpu_custom_call.1} parent=1 // loop_footer_branch
      %12 = sbr.rel target = $region3
    $region8: #{tpu_custom_call.1} parent=1 // loop_exit
      _
    %1809 = vsyncpa [#allocation5], 1
    %s1810 = scalar_lea.sflag [#allocation5], 1
    %1811 = vsyncpa %s1810, 1

</llo_original>
